<compile_context>
chip_gen: v7x
topology: tpu7x:2x2x1
jax: 0.10.0
libtpu: 0.0.40
codegen_flags: <defaults>
</compile_context>

<pallas_src>
import math

import jax
import jax.numpy as jnp
from jax.experimental import pallas as pl
from jax.experimental.pallas import tpu as pltpu


# ---------------------------------------------------------------------------
# helpers: VMEM budget + tile selection (generation-aware)
# ---------------------------------------------------------------------------

def _vmem_limit_bytes():
    """Explicit scoped-VMEM limit with headroom (defaults are only 16/32 MiB)."""
    try:
        cap = int(pltpu.get_tpu_info().vmem_capacity_bytes)
    except Exception:
        cap = 64 * 1024 * 1024  # conservative: v7x physical VMEM per TensorCore
    return cap * 3 // 4


def _compiler_params(dim_sems):
    return pltpu.CompilerParams(
        dimension_semantics=dim_sems,
        vmem_limit_bytes=_vmem_limit_bytes(),
    )


def _proj_tiles(rows, d_in, d_out, n_streams, budget):
    """Pick (row_tile, n_tile) for a row x N tiled linear, under a VMEM budget."""
    row_cands = [c for c in (1024, 512, 256, 128, 64, 32, 16, 8) if rows % c == 0] or [rows]
    n_cands = [c for c in (1024, 512, 256, 128) if d_out % c == 0] or [d_out]

    def usage(rt, tn):
        x = n_streams * 2 * rt * d_in * 4        # activations (<= f32), 2 buffers
        w = n_streams * 2 * d_in * tn * 2        # bf16 weight tiles, 2 buffers
        b = n_streams * 2 * max(tn, 128) * 4     # bias tiles (lane padded)
        o = n_streams * 2 * rt * tn * 4          # outputs (<= f32), 2 buffers
        return x + w + b + o

    for rt in row_cands:
        for tn in n_cands:
            if usage(rt, tn) <= budget:
                return rt, tn
    return row_cands[-1], n_cands[-1]


def _flash_tiles(seq, d_model, num_heads, batch, budget):
    """Pick (q_tile, kv_tile, kv_buffer_count) for flash attention."""
    q_cands = [c for c in (256, 128, 64, 32, 16, 8) if seq % c == 0] or [seq]
    kv_cands = [c for c in (1024, 512, 256, 128, 64, 32, 16, 8) if seq % c == 0] or [seq]

    def usage(tq, tk, nbuf):
        q_b = 2 * tq * d_model * 2               # bf16 Q block, double buffered
        o_b = 2 * tq * d_model * 2               # bf16 output block
        kv_b = 2 * nbuf * tk * d_model * 2       # bf16 K and V blocks
        acc = tq * d_model * 4                   # f32 accumulator scratch
        ml = 2 * num_heads * tq * 128 * 4        # m/l scratch (lane padded)
        return q_b + o_b + kv_b + acc + ml

    for tq in q_cands:
        for tk in kv_cands:
            for nbuf in (3, 2):
                if nbuf == 3 and seq // tk < 3:
                    continue                      # deeper buffering only helps with >=3 steps
                if usage(tq, tk, nbuf) <= budget:
                    # v7x megacore balance: keep the parallel extent (B * q_tiles) >= 2.
                    if batch * (seq // tq) < 2:
                        smaller = [c for c in q_cands
                                   if c < tq and usage(c, tk, nbuf) <= budget]
                        if smaller and batch * (seq // smaller[0]) >= 2:
                            tq = smaller[0]
                    return tq, tk, nbuf
    return q_cands[-1], kv_cands[-1], 2


def _kv_block_spec(block_shape, index_map, buffers):
    """K/V spec with optional deeper pipelining (falls back if unsupported)."""
    if buffers > 2:
        try:
            return pl.BlockSpec(block_shape, index_map,
                                pipeline_mode=pl.Buffered(buffers))
        except TypeError:
            pass
    return pl.BlockSpec(block_shape, index_map)


# ---------------------------------------------------------------------------
# projection kernels (bf16 MXU operands, f32 accumulate, N-tiled weights)
# ---------------------------------------------------------------------------

def _qkv_proj_kernel(q_ref, k_ref, v_ref,
                     wq_ref, bq_ref, wk_ref, bk_ref, wv_ref, bv_ref,
                     qo_ref, ko_ref, vo_ref):
    def proj(x_ref, w_ref, b_ref, o_ref):
        y = jnp.dot(x_ref[...].astype(jnp.bfloat16), w_ref[...],
                    preferred_element_type=jnp.float32)
        o_ref[...] = (y + b_ref[...]).astype(o_ref.dtype)

    proj(q_ref, wq_ref, bq_ref, qo_ref)
    proj(k_ref, wk_ref, bk_ref, ko_ref)
    proj(v_ref, wv_ref, bv_ref, vo_ref)


def _linear_kernel(x_ref, w_ref, b_ref, o_ref):
    y = jnp.dot(x_ref[...].astype(jnp.bfloat16), w_ref[...],
                preferred_element_type=jnp.float32)
    o_ref[...] = (y + b_ref[...]).astype(o_ref.dtype)


def _qkv_projection(qf, kf, vf, wq, bq, wk, bk, wv, bv, *, row_tile, n_tile):
    R, D = qf.shape
    # Activations resident across the inner N loop (index_map constant in n);
    # weight / bias / output tiles stream along the N axis.
    x_spec = pl.BlockSpec((row_tile, D), lambda i, n: (i, 0))
    w_spec = pl.BlockSpec((D, n_tile), lambda i, n: (0, n))
    b_spec = pl.BlockSpec((1, n_tile), lambda i, n: (0, n))
    o_spec = pl.BlockSpec((row_tile, n_tile), lambda i, n: (i, n))
    out_sds = jax.ShapeDtypeStruct((R, D), jnp.bfloat16)

    return pl.pallas_call(
        _qkv_proj_kernel,
        out_shape=(out_sds, out_sds, out_sds),
        grid_spec=pltpu.PrefetchScalarGridSpec(
            num_scalar_prefetch=0,
            grid=(R // row_tile, D // n_tile),
            in_specs=[x_spec, x_spec, x_spec,
                      w_spec, b_spec, w_spec, b_spec, w_spec, b_spec],
            out_specs=(o_spec, o_spec, o_spec),
        ),
        compiler_params=_compiler_params(("parallel", "parallel")),
    )(qf, kf, vf, wq, bq, wk, bk, wv, bv)


def _out_projection(x, w, b, *, row_tile, n_tile, out_dtype):
    R, D_in = x.shape
    D_out = w.shape[1]
    x_spec = pl.BlockSpec((row_tile, D_in), lambda i, n: (i, 0))
    w_spec = pl.BlockSpec((D_in, n_tile), lambda i, n: (0, n))
    b_spec = pl.BlockSpec((1, n_tile), lambda i, n: (0, n))
    o_spec = pl.BlockSpec((row_tile, n_tile), lambda i, n: (i, n))
    return pl.pallas_call(
        _linear_kernel,
        out_shape=jax.ShapeDtypeStruct((R, D_out), out_dtype),
        grid_spec=pltpu.PrefetchScalarGridSpec(
            num_scalar_prefetch=0,
            grid=(R // row_tile, D_out // n_tile),
            in_specs=[x_spec, w_spec, b_spec],
            out_specs=o_spec,
        ),
        compiler_params=_compiler_params(("parallel", "parallel")),
    )(x, w.astype(jnp.bfloat16), b)


# ---------------------------------------------------------------------------
# flash-style attention: heads sliced from the lane dim, online softmax over
# kv tiles, lane-dense (1, q_tile, D) output store
# ---------------------------------------------------------------------------

def _make_flash_kernel(num_heads, head_dim):
    def flash_kernel(q_ref, k_ref, v_ref, o_ref, m_sc, l_sc, acc_sc):
        ki = pl.program_id(2)

        @pl.when(ki == 0)
        def _():
            m_sc[...] = jnp.full_like(m_sc, -jnp.inf)
            l_sc[...] = jnp.zeros_like(l_sc)
            acc_sc[...] = jnp.zeros_like(acc_sc)

        q = q_ref[0]    # (TQ, D) bf16, already scaled by 1/sqrt(head_dim)
        k = k_ref[0]    # (TK, D) bf16
        v = v_ref[0]    # (TK, D) bf16

        for h in range(num_heads):
            lo = h * head_dim
            hi = lo + head_dim
            q_h = q[:, lo:hi]
            k_h = k[:, lo:hi]
            v_h = v[:, lo:hi]

            # (TQ, TK) logits for this head; MXU with f32 accumulation.
            s = jax.lax.dot_general(q_h, k_h, (((1,), (1,)), ((), ())),
                                    preferred_element_type=jnp.float32)

            m_prev = m_sc[h]                                          # (TQ, 1)
            m_new = jnp.maximum(m_prev, jnp.max(s, axis=-1, keepdims=True))
            alpha = jnp.exp(m_prev - m_new)                           # (TQ, 1)
            p = jnp.exp(s - m_new)                                    # (TQ, TK) f32
            l_sc[h] = alpha * l_sc[h] + jnp.sum(p, axis=-1, keepdims=True)
            acc_sc[:, lo:hi] = alpha * acc_sc[:, lo:hi] + jnp.dot(
                p.astype(v_h.dtype), v_h, preferred_element_type=jnp.float32)
            m_sc[h] = m_new

        @pl.when(ki == pl.num_programs(2) - 1)
        def _():
            # Per-head normalization in place, then one lane-dense (TQ, D) store.
            for h in range(num_heads):
                lo = h * head_dim
                hi = lo + head_dim
                acc_sc[:, lo:hi] = acc_sc[:, lo:hi] * pl.reciprocal(
                    l_sc[h], approx=False)
            o_ref[...] = acc_sc[...][None].astype(o_ref.dtype)

    return flash_kernel


def _flash_attention(q, k, v, *, num_heads, q_tile, kv_tile, kv_buffers):
    B, S, D = q.shape
    hd = D // num_heads
    kernel = _make_flash_kernel(num_heads, hd)

    q_spec = pl.BlockSpec((1, q_tile, D), lambda b, qi, ki: (b, qi, 0))
    o_spec = pl.BlockSpec((1, q_tile, D), lambda b, qi, ki: (b, qi, 0))
    kv_spec = _kv_block_spec((1, kv_tile, D), lambda b, qi, ki: (b, ki, 0),
                             kv_buffers)

    return pl.pallas_call(
        kernel,
        out_shape=jax.ShapeDtypeStruct((B, S, D), jnp.bfloat16),
        grid_spec=pltpu.PrefetchScalarGridSpec(
            num_scalar_prefetch=0,
            grid=(B, S // q_tile, S // kv_tile),
            in_specs=[q_spec, kv_spec, kv_spec],
            out_specs=o_spec,
            scratch_shapes=[
                pltpu.VMEM((num_heads, q_tile, 1), jnp.float32),   # running max
                pltpu.VMEM((num_heads, q_tile, 1), jnp.float32),   # running denom
                pltpu.VMEM((q_tile, D), jnp.float32),              # unnormalized ctx
            ],
        ),
        # (B, q_tiles) parallel -> megacore sharding on v7x; kv axis is the
        # online-softmax reduction and must stay "arbitrary".
        compiler_params=_compiler_params(("parallel", "parallel", "arbitrary")),
    )(q, k, v)


# ---------------------------------------------------------------------------
# public wrapper
# ---------------------------------------------------------------------------

def multi_head_attention(query, key, value, params, *, num_heads):
    """query/key/value: (B, S, D).  params: (in,out) weights and (1,D) biases."""
    B, S, D = query.shape
    assert D % num_heads == 0
    assert key.shape == query.shape and value.shape == query.shape
    hd = D // num_heads
    rows = B * S

    budget = int(_vmem_limit_bytes() * 0.8)
    proj_row_tile, proj_n_tile = _proj_tiles(rows, D, D, 3, budget)
    out_row_tile, out_n_tile = _proj_tiles(rows, D, D, 1, budget)
    q_tile, kv_tile, kv_bufs = _flash_tiles(S, D, num_heads, B, budget)

    # Fold the 1/sqrt(head_dim) softmax scale into the Q projection:
    # softmax((x Wq s) K^T) == softmax((x Wq) K^T * s).
    scale = 1.0 / math.sqrt(hd)
    wq = (params["wq"] * scale).astype(jnp.bfloat16)
    bq = params["bq"] * scale
    wk = params["wk"].astype(jnp.bfloat16)
    wv = params["wv"].astype(jnp.bfloat16)

    # 1) fused Q/K/V projections (row x N tiled).
    q_p, k_p, v_p = _qkv_projection(
        query.reshape(rows, D), key.reshape(rows, D), value.reshape(rows, D),
        wq, bq, wk, params["bk"], wv, params["bv"],
        row_tile=proj_row_tile, n_tile=proj_n_tile)

    # 2) flash attention directly on the (B, S, D) layout (free reshapes only;
    #    heads are sliced from the lane dim inside the kernel).
    ctx = _flash_attention(
        q_p.reshape(B, S, D), k_p.reshape(B, S, D), v_p.reshape(B, S, D),
        num_heads=num_heads, q_tile=q_tile, kv_tile=kv_tile,
        kv_buffers=kv_bufs)                                   # (B, S, D) bf16

    # 3) output projection.
    out = _out_projection(ctx.reshape(rows, D), params["wo"], params["bo"],
                          row_tile=out_row_tile, n_tile=out_n_tile,
                          out_dtype=query.dtype)
    return out.reshape(B, S, D)


# ---------------------------------------------------------------------------
# reference + init
# ---------------------------------------------------------------------------

def _reference(query, key, value, params, *, num_heads):
    """Pure-JAX f32 reference mirroring the PyTorch forward (eval mode)."""
    B, S, D = query.shape
    head_dim = D // num_heads

    def lin(x, w, b):
        return x @ w + b  # w stored as (in, out)

    q = lin(query, params["wq"], params["bq"][0]).reshape(B, S, num_heads, head_dim)
    k = lin(key,   params["wk"], params["bk"][0]).reshape(B, S, num_heads, head_dim)
    v = lin(value, params["wv"], params["bv"][0]).reshape(B, S, num_heads, head_dim)

    logits = jnp.einsum("bqhd,bkhd->bhqk", q, k) / math.sqrt(head_dim)
    attn = jax.nn.softmax(logits, axis=-1)
    ctx = jnp.einsum("bhqv,bvhd->bqhd", attn, v).reshape(B, S, D)
    return lin(ctx, params["wo"], params["bo"][0])


def init_params(key, d_model):
    """Deterministic PyTorch-Linear-style init (uniform(-1/sqrt(in), 1/sqrt(in)))."""
    bound = 1.0 / math.sqrt(d_model)
    names = ["wq", "bq", "wk", "bk", "wv", "bv", "wo", "bo"]
    keys = jax.random.split(key, len(names))
    params = {}
    for n, k in zip(names, keys):
        if n.startswith("w"):
            # stored as (in, out) == W^T relative to PyTorch's (out, in)
            params[n] = jax.random.uniform(k, (d_model, d_model), jnp.float32,
                                           minval=-bound, maxval=bound)
        else:
            params[n] = jax.random.uniform(k, (1, d_model), jnp.float32,
                                           minval=-bound, maxval=bound)
    return params


if __name__ == "__main__":
    B, S, D, H = 2, 8, 32, 4

    root = jax.random.PRNGKey(0)
    kq, kk, kv, kp = jax.random.split(root, 4)
    query = jax.random.normal(kq, (B, S, D), jnp.float32)
    key_in = jax.random.normal(kk, (B, S, D), jnp.float32)
    value = jax.random.normal(kv, (B, S, D), jnp.float32)
    params = init_params(kp, D)

    mha = jax.jit(multi_head_attention, static_argnames=("num_heads",))
    out = jax.block_until_ready(mha(query, key_in, value, params, num_heads=H))

    ref = _reference(query, key_in, value, params, num_heads=H)
    assert out.shape == (B, S, D)
    max_err = float(jnp.max(jnp.abs(out - ref)))
    # bf16 MXU operands -> ~1e-3..1e-2 deviation vs the f32 reference.
    assert max_err < 3e-2, f"mismatch vs JAX reference (max abs err {max_err})"
    print("KERNEL_OK")
</pallas_src>

<mosaic_0001>
module attributes {stable_mosaic.version = 11 : i64} {
  func.func @_qkv_proj_kernel(%arg0: i32, %arg1: i32, %arg2: memref<16x32xf32, #tpu.memory_space<vmem>>, %arg3: memref<16x32xf32, #tpu.memory_space<vmem>>, %arg4: memref<16x32xf32, #tpu.memory_space<vmem>>, %arg5: memref<32x32xbf16, #tpu.memory_space<vmem>>, %arg6: memref<1x32xf32, #tpu.memory_space<vmem>>, %arg7: memref<32x32xbf16, #tpu.memory_space<vmem>>, %arg8: memref<1x32xf32, #tpu.memory_space<vmem>>, %arg9: memref<32x32xbf16, #tpu.memory_space<vmem>>, %arg10: memref<1x32xf32, #tpu.memory_space<vmem>>, %arg11: memref<16x32xbf16, #tpu.memory_space<vmem>>, %arg12: memref<16x32xbf16, #tpu.memory_space<vmem>>, %arg13: memref<16x32xbf16, #tpu.memory_space<vmem>>) attributes {dimension_semantics = [#tpu.dimension_semantics<parallel>, #tpu.dimension_semantics<parallel>], iteration_bounds = array<i64: 1, 1>, scalar_prefetch = 0 : i64, scratch_operands = 0 : i64, tpu.core_type = #tpu.core_type<tc>, window_params = [{transform_indices = @transform_0, window_bounds = array<i64: 16, 32>}, {transform_indices = @transform_1, window_bounds = array<i64: 16, 32>}, {transform_indices = @transform_2, window_bounds = array<i64: 16, 32>}, {transform_indices = @transform_3, window_bounds = array<i64: 32, 32>}, {transform_indices = @transform_4, window_bounds = array<i64: 1, 32>}, {transform_indices = @transform_5, window_bounds = array<i64: 32, 32>}, {transform_indices = @transform_6, window_bounds = array<i64: 1, 32>}, {transform_indices = @transform_7, window_bounds = array<i64: 32, 32>}, {transform_indices = @transform_8, window_bounds = array<i64: 1, 32>}, {transform_indices = @transform_9, window_bounds = array<i64: 16, 32>}, {transform_indices = @transform_10, window_bounds = array<i64: 16, 32>}, {transform_indices = @transform_11, window_bounds = array<i64: 16, 32>}]} {
    %c0 = arith.constant 0 : index
    %c0_0 = arith.constant 0 : index
    %0 = vector.load %arg2[%c0, %c0_0] : memref<16x32xf32, #tpu.memory_space<vmem>>, vector<16x32xf32>
    %1 = arith.truncf %0 : vector<16x32xf32> to vector<16x32xbf16>
    %c0_1 = arith.constant 0 : index
    %c0_2 = arith.constant 0 : index
    %2 = vector.load %arg5[%c0_1, %c0_2] : memref<32x32xbf16, #tpu.memory_space<vmem>>, vector<32x32xbf16>
    %cst = arith.constant dense<0.000000e+00> : vector<16x32xf32>
    %3 = tpu.matmul %1, %2, %cst {dimension_numbers = #tpu.dot_dimension_numbers<[1], [0], [0], [1], [0, 0, 1, 1], [], []>} : vector<16x32xbf16>, vector<32x32xbf16>, vector<16x32xf32> -> vector<16x32xf32>
    %c0_3 = arith.constant 0 : index
    %c0_4 = arith.constant 0 : index
    %4 = vector.load %arg6[%c0_3, %c0_4] : memref<1x32xf32, #tpu.memory_space<vmem>>, vector<1x32xf32>
    %5 = vector.broadcast %4 : vector<1x32xf32> to vector<16x32xf32>
    %6 = arith.addf %3, %5 : vector<16x32xf32>
    %7 = arith.truncf %6 : vector<16x32xf32> to vector<16x32xbf16>
    %c0_5 = arith.constant 0 : index
    %c0_6 = arith.constant 0 : index
    %8 = vector.load %arg11[%c0_5, %c0_6] : memref<16x32xbf16, #tpu.memory_space<vmem>>, vector<16x32xbf16>
    tpu.vector_store %arg11[%c0_5, %c0_6], %7 {strides = array<i32>} : memref<16x32xbf16, #tpu.memory_space<vmem>>, vector<16x32xbf16>,
    %c0_7 = arith.constant 0 : index
    %c0_8 = arith.constant 0 : index
    %9 = vector.load %arg3[%c0_7, %c0_8] : memref<16x32xf32, #tpu.memory_space<vmem>>, vector<16x32xf32>
    %10 = arith.truncf %9 : vector<16x32xf32> to vector<16x32xbf16>
    %c0_9 = arith.constant 0 : index
    %c0_10 = arith.constant 0 : index
    %11 = vector.load %arg7[%c0_9, %c0_10] : memref<32x32xbf16, #tpu.memory_space<vmem>>, vector<32x32xbf16>
    %cst_11 = arith.constant dense<0.000000e+00> : vector<16x32xf32>
    %12 = tpu.matmul %10, %11, %cst_11 {dimension_numbers = #tpu.dot_dimension_numbers<[1], [0], [0], [1], [0, 0, 1, 1], [], []>} : vector<16x32xbf16>, vector<32x32xbf16>, vector<16x32xf32> -> vector<16x32xf32>
    %c0_12 = arith.constant 0 : index
    %c0_13 = arith.constant 0 : index
    %13 = vector.load %arg8[%c0_12, %c0_13] : memref<1x32xf32, #tpu.memory_space<vmem>>, vector<1x32xf32>
    %14 = vector.broadcast %13 : vector<1x32xf32> to vector<16x32xf32>
    %15 = arith.addf %12, %14 : vector<16x32xf32>
    %16 = arith.truncf %15 : vector<16x32xf32> to vector<16x32xbf16>
    %c0_14 = arith.constant 0 : index
    %c0_15 = arith.constant 0 : index
    %17 = vector.load %arg12[%c0_14, %c0_15] : memref<16x32xbf16, #tpu.memory_space<vmem>>, vector<16x32xbf16>
    tpu.vector_store %arg12[%c0_14, %c0_15], %16 {strides = array<i32>} : memref<16x32xbf16, #tpu.memory_space<vmem>>, vector<16x32xbf16>,
    %c0_16 = arith.constant 0 : index
    %c0_17 = arith.constant 0 : index
    %18 = vector.load %arg4[%c0_16, %c0_17] : memref<16x32xf32, #tpu.memory_space<vmem>>, vector<16x32xf32>
    %19 = arith.truncf %18 : vector<16x32xf32> to vector<16x32xbf16>
    %c0_18 = arith.constant 0 : index
    %c0_19 = arith.constant 0 : index
    %20 = vector.load %arg9[%c0_18, %c0_19] : memref<32x32xbf16, #tpu.memory_space<vmem>>, vector<32x32xbf16>
    %cst_20 = arith.constant dense<0.000000e+00> : vector<16x32xf32>
    %21 = tpu.matmul %19, %20, %cst_20 {dimension_numbers = #tpu.dot_dimension_numbers<[1], [0], [0], [1], [0, 0, 1, 1], [], []>} : vector<16x32xbf16>, vector<32x32xbf16>, vector<16x32xf32> -> vector<16x32xf32>
    %c0_21 = arith.constant 0 : index
    %c0_22 = arith.constant 0 : index
    %22 = vector.load %arg10[%c0_21, %c0_22] : memref<1x32xf32, #tpu.memory_space<vmem>>, vector<1x32xf32>
    %23 = vector.broadcast %22 : vector<1x32xf32> to vector<16x32xf32>
    %24 = arith.addf %21, %23 : vector<16x32xf32>
    %25 = arith.truncf %24 : vector<16x32xf32> to vector<16x32xbf16>
    %c0_23 = arith.constant 0 : index
    %c0_24 = arith.constant 0 : index
    %26 = vector.load %arg13[%c0_23, %c0_24] : memref<16x32xbf16, #tpu.memory_space<vmem>>, vector<16x32xbf16>
    tpu.vector_store %arg13[%c0_23, %c0_24], %25 {strides = array<i32>} : memref<16x32xbf16, #tpu.memory_space<vmem>>, vector<16x32xbf16>,
    return
  }
  func.func @transform_0(%arg0: i32, %arg1: i32) -> (i32, i32) {
    %c0_i32 = arith.constant 0 : i32
    %c0_i32_0 = arith.constant 0 : i32
    return %arg0, %c0_i32 : i32, i32
  }
  func.func @transform_1(%arg0: i32, %arg1: i32) -> (i32, i32) {
    %c0_i32 = arith.constant 0 : i32
    %c0_i32_0 = arith.constant 0 : i32
    return %arg0, %c0_i32 : i32, i32
  }
  func.func @transform_2(%arg0: i32, %arg1: i32) -> (i32, i32) {
    %c0_i32 = arith.constant 0 : i32
    %c0_i32_0 = arith.constant 0 : i32
    return %arg0, %c0_i32 : i32, i32
  }
  func.func @transform_3(%arg0: i32, %arg1: i32) -> (i32, i32) {
    %c0_i32 = arith.constant 0 : i32
    %c0_i32_0 = arith.constant 0 : i32
    return %c0_i32, %arg1 : i32, i32
  }
  func.func @transform_4(%arg0: i32, %arg1: i32) -> (i32, i32) {
    %c0_i32 = arith.constant 0 : i32
    %c0_i32_0 = arith.constant 0 : i32
    return %c0_i32, %arg1 : i32, i32
  }
  func.func @transform_5(%arg0: i32, %arg1: i32) -> (i32, i32) {
    %c0_i32 = arith.constant 0 : i32
    %c0_i32_0 = arith.constant 0 : i32
    return %c0_i32, %arg1 : i32, i32
  }
  func.func @transform_6(%arg0: i32, %arg1: i32) -> (i32, i32) {
    %c0_i32 = arith.constant 0 : i32
    %c0_i32_0 = arith.constant 0 : i32
    return %c0_i32, %arg1 : i32, i32
  }
  func.func @transform_7(%arg0: i32, %arg1: i32) -> (i32, i32) {
    %c0_i32 = arith.constant 0 : i32
    %c0_i32_0 = arith.constant 0 : i32
    return %c0_i32, %arg1 : i32, i32
  }
  func.func @transform_8(%arg0: i32, %arg1: i32) -> (i32, i32) {
    %c0_i32 = arith.constant 0 : i32
    %c0_i32_0 = arith.constant 0 : i32
    return %c0_i32, %arg1 : i32, i32
  }
  func.func @transform_9(%arg0: i32, %arg1: i32) -> (i32, i32) {
    %c0_i32 = arith.constant 0 : i32
    return %arg0, %arg1 : i32, i32
  }
  func.func @transform_10(%arg0: i32, %arg1: i32) -> (i32, i32) {
    %c0_i32 = arith.constant 0 : i32
    return %arg0, %arg1 : i32, i32
  }
  func.func @transform_11(%arg0: i32, %arg1: i32) -> (i32, i32) {
    %c0_i32 = arith.constant 0 : i32
    return %arg0, %arg1 : i32, i32
  }
}

module attributes {stable_mosaic.version = 11 : i64} {
  func.func @_linear_kernel(%arg0: i32, %arg1: i32, %arg2: memref<16x32xbf16, #tpu.memory_space<vmem>>, %arg3: memref<32x32xbf16, #tpu.memory_space<vmem>>, %arg4: memref<1x32xf32, #tpu.memory_space<vmem>>, %arg5: memref<16x32xf32, #tpu.memory_space<vmem>>) attributes {dimension_semantics = [#tpu.dimension_semantics<parallel>, #tpu.dimension_semantics<parallel>], iteration_bounds = array<i64: 1, 1>, scalar_prefetch = 0 : i64, scratch_operands = 0 : i64, tpu.core_type = #tpu.core_type<tc>, window_params = [{transform_indices = @transform_0, window_bounds = array<i64: 16, 32>}, {transform_indices = @transform_1, window_bounds = array<i64: 32, 32>}, {transform_indices = @transform_2, window_bounds = array<i64: 1, 32>}, {transform_indices = @transform_3, window_bounds = array<i64: 16, 32>}]} {
    %c0 = arith.constant 0 : index
    %c0_0 = arith.constant 0 : index
    %0 = vector.load %arg2[%c0, %c0_0] : memref<16x32xbf16, #tpu.memory_space<vmem>>, vector<16x32xbf16>
    %c0_1 = arith.constant 0 : index
    %c0_2 = arith.constant 0 : index
    %1 = vector.load %arg3[%c0_1, %c0_2] : memref<32x32xbf16, #tpu.memory_space<vmem>>, vector<32x32xbf16>
    %cst = arith.constant dense<0.000000e+00> : vector<16x32xf32>
    %2 = tpu.matmul %0, %1, %cst {dimension_numbers = #tpu.dot_dimension_numbers<[1], [0], [0], [1], [0, 0, 1, 1], [], []>} : vector<16x32xbf16>, vector<32x32xbf16>, vector<16x32xf32> -> vector<16x32xf32>
    %c0_3 = arith.constant 0 : index
    %c0_4 = arith.constant 0 : index
    %3 = vector.load %arg4[%c0_3, %c0_4] : memref<1x32xf32, #tpu.memory_space<vmem>>, vector<1x32xf32>
    %4 = vector.broadcast %3 : vector<1x32xf32> to vector<16x32xf32>
    %5 = arith.addf %2, %4 : vector<16x32xf32>
    %c0_5 = arith.constant 0 : index
    %c0_6 = arith.constant 0 : index
    %6 = vector.load %arg5[%c0_5, %c0_6] : memref<16x32xf32, #tpu.memory_space<vmem>>, vector<16x32xf32>
    tpu.vector_store %arg5[%c0_5, %c0_6], %5 {strides = array<i32>} : memref<16x32xf32, #tpu.memory_space<vmem>>, vector<16x32xf32>,
    return
  }
  func.func @transform_0(%arg0: i32, %arg1: i32) -> (i32, i32) {
    %c0_i32 = arith.constant 0 : i32
    %c0_i32_0 = arith.constant 0 : i32
    return %arg0, %c0_i32 : i32, i32
  }
  func.func @transform_1(%arg0: i32, %arg1: i32) -> (i32, i32) {
    %c0_i32 = arith.constant 0 : i32
    %c0_i32_0 = arith.constant 0 : i32
    return %c0_i32, %arg1 : i32, i32
  }
  func.func @transform_2(%arg0: i32, %arg1: i32) -> (i32, i32) {
    %c0_i32 = arith.constant 0 : i32
    %c0_i32_0 = arith.constant 0 : i32
    return %c0_i32, %arg1 : i32, i32
  }
  func.func @transform_3(%arg0: i32, %arg1: i32) -> (i32, i32) {
    %c0_i32 = arith.constant 0 : i32
    return %arg0, %arg1 : i32, i32
  }
}

module attributes {stable_mosaic.version = 11 : i64} {
  func.func @flash_kernel(%arg0: i32, %arg1: i32, %arg2: i32, %arg3: memref<1x8x32xbf16, #tpu.memory_space<vmem>>, %arg4: memref<1x8x32xbf16, #tpu.memory_space<vmem>>, %arg5: memref<1x8x32xbf16, #tpu.memory_space<vmem>>, %arg6: memref<1x8x32xbf16, #tpu.memory_space<vmem>>, %arg7: memref<4x8x1xf32, #tpu.memory_space<vmem>>, %arg8: memref<4x8x1xf32, #tpu.memory_space<vmem>>, %arg9: memref<8x32xf32, #tpu.memory_space<vmem>>) attributes {dimension_semantics = [#tpu.dimension_semantics<parallel>, #tpu.dimension_semantics<parallel>, #tpu.dimension_semantics<arbitrary>], iteration_bounds = array<i64: 2, 1, 1>, scalar_prefetch = 0 : i64, scratch_operands = 3 : i64, tpu.core_type = #tpu.core_type<tc>, window_params = [{transform_indices = @transform_0, window_bounds = array<i64: 1, 8, 32>}, {transform_indices = @transform_1, window_bounds = array<i64: 1, 8, 32>}, {transform_indices = @transform_2, window_bounds = array<i64: 1, 8, 32>}, {transform_indices = @transform_3, window_bounds = array<i64: 1, 8, 32>}]} {
    %c0_i32 = arith.constant 0 : i32
    %0 = arith.cmpi eq, %arg2, %c0_i32 : i32
    %1 = arith.extui %0 : i1 to i32
    %c0_i32_0 = arith.constant 0 : i32
    %2 = arith.cmpi ne, %1, %c0_i32_0 : i32
    scf.if %2 {
      %cst_84 = arith.constant 0xFF800000 : f32
      %144 = vector.broadcast %cst_84 : f32 to vector<4x8x1xf32>
      %c0_85 = arith.constant 0 : index
      %c0_86 = arith.constant 0 : index
      %c0_87 = arith.constant 0 : index
      %145 = vector.load %arg7[%c0_85, %c0_86, %c0_87] : memref<4x8x1xf32, #tpu.memory_space<vmem>>, vector<4x8x1xf32>
      tpu.vector_store %arg7[%c0_85, %c0_86, %c0_87], %144 {strides = array<i32>} : memref<4x8x1xf32, #tpu.memory_space<vmem>>, vector<4x8x1xf32>,
      %cst_88 = arith.constant 0.000000e+00 : f32
      %146 = vector.broadcast %cst_88 : f32 to vector<4x8x1xf32>
      %c0_89 = arith.constant 0 : index
      %c0_90 = arith.constant 0 : index
      %c0_91 = arith.constant 0 : index
      %147 = vector.load %arg8[%c0_89, %c0_90, %c0_91] : memref<4x8x1xf32, #tpu.memory_space<vmem>>, vector<4x8x1xf32>
      tpu.vector_store %arg8[%c0_89, %c0_90, %c0_91], %146 {strides = array<i32>} : memref<4x8x1xf32, #tpu.memory_space<vmem>>, vector<4x8x1xf32>,
      %cst_92 = arith.constant 0.000000e+00 : f32
      %148 = vector.broadcast %cst_92 : f32 to vector<8x32xf32>
      %c0_93 = arith.constant 0 : index
      %c0_94 = arith.constant 0 : index
      %149 = vector.load %arg9[%c0_93, %c0_94] : memref<8x32xf32, #tpu.memory_space<vmem>>, vector<8x32xf32>
      tpu.vector_store %arg9[%c0_93, %c0_94], %148 {strides = array<i32>} : memref<8x32xf32, #tpu.memory_space<vmem>>, vector<8x32xf32>,
    } else {
    }
    %c0 = arith.constant 0 : index
    %c0_1 = arith.constant 0 : index
    %c0_2 = arith.constant 0 : index
    %3 = vector.load %arg3[%c0, %c0_1, %c0_2] : memref<1x8x32xbf16, #tpu.memory_space<vmem>>, vector<1x8x32xbf16>
    %4 = vector.shape_cast %3 : vector<1x8x32xbf16> to vector<8x32xbf16>
    %c0_3 = arith.constant 0 : index
    %c0_4 = arith.constant 0 : index
    %c0_5 = arith.constant 0 : index
    %5 = vector.load %arg4[%c0_3, %c0_4, %c0_5] : memref<1x8x32xbf16, #tpu.memory_space<vmem>>, vector<1x8x32xbf16>
    %6 = vector.shape_cast %5 : vector<1x8x32xbf16> to vector<8x32xbf16>
    %c0_6 = arith.constant 0 : index
    %c0_7 = arith.constant 0 : index
    %c0_8 = arith.constant 0 : index
    %7 = vector.load %arg5[%c0_6, %c0_7, %c0_8] : memref<1x8x32xbf16, #tpu.memory_space<vmem>>, vector<1x8x32xbf16>
    %8 = vector.shape_cast %7 : vector<1x8x32xbf16> to vector<8x32xbf16>
    %9 = vector.extract_strided_slice %4 {offsets = [0, 0], sizes = [8, 8], strides = [1, 1]} : vector<8x32xbf16> to vector<8x8xbf16>
    %10 = vector.extract_strided_slice %6 {offsets = [0, 0], sizes = [8, 8], strides = [1, 1]} : vector<8x32xbf16> to vector<8x8xbf16>
    %11 = vector.extract_strided_slice %8 {offsets = [0, 0], sizes = [8, 8], strides = [1, 1]} : vector<8x32xbf16> to vector<8x8xbf16>
    %cst = arith.constant dense<0.000000e+00> : vector<8x8xf32>
    %12 = tpu.matmul %9, %10, %cst {dimension_numbers = #tpu.dot_dimension_numbers<[1], [1], [0], [0], [0, 0, 1, 0], [], []>} : vector<8x8xbf16>, vector<8x8xbf16>, vector<8x8xf32> -> vector<8x8xf32>
    %c0_9 = arith.constant 0 : index
    %c0_10 = arith.constant 0 : index
    %c0_11 = arith.constant 0 : index
    %13 = vector.load %arg7[%c0_9, %c0_10, %c0_11] : memref<4x8x1xf32, #tpu.memory_space<vmem>>, vector<1x8x1xf32>
    %14 = vector.shape_cast %13 : vector<1x8x1xf32> to vector<8x1xf32>
    %cst_12 = arith.constant dense<0xFF800000> : vector<8xf32>
    %15 = vector.multi_reduction <maximumf>, %12, %cst_12 [1] : vector<8x8xf32> to vector<8xf32>
    %16 = vector.shape_cast %15 : vector<8xf32> to vector<8x1xf32>
    %17 = arith.maximumf %14, %16 : vector<8x1xf32>
    %18 = arith.subf %14, %17 : vector<8x1xf32>
    %19 = math.exp %18 : vector<8x1xf32>
    %20 = vector.broadcast %17 : vector<8x1xf32> to vector<8x8xf32>
    %21 = arith.subf %12, %20 : vector<8x8xf32>
    %22 = math.exp %21 : vector<8x8xf32>
    %c0_13 = arith.constant 0 : index
    %c0_14 = arith.constant 0 : index
    %c0_15 = arith.constant 0 : index
    %23 = vector.load %arg8[%c0_13, %c0_14, %c0_15] : memref<4x8x1xf32, #tpu.memory_space<vmem>>, vector<1x8x1xf32>
    %24 = vector.shape_cast %23 : vector<1x8x1xf32> to vector<8x1xf32>
    %25 = arith.mulf %19, %24 : vector<8x1xf32>
    %cst_16 = arith.constant dense<0.000000e+00> : vector<8xf32>
    %26 = vector.multi_reduction <add>, %22, %cst_16 [1] : vector<8x8xf32> to vector<8xf32>
    %27 = vector.shape_cast %26 : vector<8xf32> to vector<8x1xf32>
    %28 = arith.addf %25, %27 : vector<8x1xf32>
    %c0_17 = arith.constant 0 : index
    %c0_18 = arith.constant 0 : index
    %c0_19 = arith.constant 0 : index
    %29 = vector.load %arg8[%c0_17, %c0_18, %c0_19] : memref<4x8x1xf32, #tpu.memory_space<vmem>>, vector<1x8x1xf32>
    %30 = vector.shape_cast %29 : vector<1x8x1xf32> to vector<8x1xf32>
    %31 = vector.shape_cast %28 : vector<8x1xf32> to vector<1x8x1xf32>
    tpu.vector_store %arg8[%c0_17, %c0_18, %c0_19], %31 {strides = array<i32>} : memref<4x8x1xf32, #tpu.memory_space<vmem>>, vector<1x8x1xf32>,
    %c0_20 = arith.constant 0 : index
    %c0_21 = arith.constant 0 : index
    %32 = vector.load %arg9[%c0_20, %c0_21] : memref<8x32xf32, #tpu.memory_space<vmem>>, vector<8x8xf32>
    %33 = vector.broadcast %19 : vector<8x1xf32> to vector<8x8xf32>
    %34 = arith.mulf %33, %32 : vector<8x8xf32>
    %35 = arith.truncf %22 : vector<8x8xf32> to vector<8x8xbf16>
    %cst_22 = arith.constant dense<0.000000e+00> : vector<8x8xf32>
    %36 = tpu.matmul %35, %11, %cst_22 {dimension_numbers = #tpu.dot_dimension_numbers<[1], [0], [0], [1], [0, 0, 1, 1], [], []>} : vector<8x8xbf16>, vector<8x8xbf16>, vector<8x8xf32> -> vector<8x8xf32>
    %37 = arith.addf %34, %36 : vector<8x8xf32>
    %c0_23 = arith.constant 0 : index
    %c0_24 = arith.constant 0 : index
    %38 = vector.load %arg9[%c0_23, %c0_24] : memref<8x32xf32, #tpu.memory_space<vmem>>, vector<8x8xf32>
    tpu.vector_store %arg9[%c0_23, %c0_24], %37 {strides = array<i32>} : memref<8x32xf32, #tpu.memory_space<vmem>>, vector<8x8xf32>,
    %c0_25 = arith.constant 0 : index
    %c0_26 = arith.constant 0 : index
    %c0_27 = arith.constant 0 : index
    %39 = vector.load %arg7[%c0_25, %c0_26, %c0_27] : memref<4x8x1xf32, #tpu.memory_space<vmem>>, vector<1x8x1xf32>
    %40 = vector.shape_cast %39 : vector<1x8x1xf32> to vector<8x1xf32>
    %41 = vector.shape_cast %17 : vector<8x1xf32> to vector<1x8x1xf32>
    tpu.vector_store %arg7[%c0_25, %c0_26, %c0_27], %41 {strides = array<i32>} : memref<4x8x1xf32, #tpu.memory_space<vmem>>, vector<1x8x1xf32>,
    %42 = vector.extract_strided_slice %4 {offsets = [0, 8], sizes = [8, 8], strides = [1, 1]} : vector<8x32xbf16> to vector<8x8xbf16>
    %43 = vector.extract_strided_slice %6 {offsets = [0, 8], sizes = [8, 8], strides = [1, 1]} : vector<8x32xbf16> to vector<8x8xbf16>
    %44 = vector.extract_strided_slice %8 {offsets = [0, 8], sizes = [8, 8], strides = [1, 1]} : vector<8x32xbf16> to vector<8x8xbf16>
    %cst_28 = arith.constant dense<0.000000e+00> : vector<8x8xf32>
    %45 = tpu.matmul %42, %43, %cst_28 {dimension_numbers = #tpu.dot_dimension_numbers<[1], [1], [0], [0], [0, 0, 1, 0], [], []>} : vector<8x8xbf16>, vector<8x8xbf16>, vector<8x8xf32> -> vector<8x8xf32>
    %c1 = arith.constant 1 : index
    %c0_29 = arith.constant 0 : index
    %c0_30 = arith.constant 0 : index
    %46 = vector.load %arg7[%c1, %c0_29, %c0_30] : memref<4x8x1xf32, #tpu.memory_space<vmem>>, vector<1x8x1xf32>
    %47 = vector.shape_cast %46 : vector<1x8x1xf32> to vector<8x1xf32>
    %cst_31 = arith.constant dense<0xFF800000> : vector<8xf32>
    %48 = vector.multi_reduction <maximumf>, %45, %cst_31 [1] : vector<8x8xf32> to vector<8xf32>
    %49 = vector.shape_cast %48 : vector<8xf32> to vector<8x1xf32>
    %50 = arith.maximumf %47, %49 : vector<8x1xf32>
    %51 = arith.subf %47, %50 : vector<8x1xf32>
    %52 = math.exp %51 : vector<8x1xf32>
    %53 = vector.broadcast %50 : vector<8x1xf32> to vector<8x8xf32>
    %54 = arith.subf %45, %53 : vector<8x8xf32>
    %55 = math.exp %54 : vector<8x8xf32>
    %c1_32 = arith.constant 1 : index
    %c0_33 = arith.constant 0 : index
    %c0_34 = arith.constant 0 : index
    %56 = vector.load %arg8[%c1_32, %c0_33, %c0_34] : memref<4x8x1xf32, #tpu.memory_space<vmem>>, vector<1x8x1xf32>
    %57 = vector.shape_cast %56 : vector<1x8x1xf32> to vector<8x1xf32>
    %58 = arith.mulf %52, %57 : vector<8x1xf32>
    %cst_35 = arith.constant dense<0.000000e+00> : vector<8xf32>
    %59 = vector.multi_reduction <add>, %55, %cst_35 [1] : vector<8x8xf32> to vector<8xf32>
    %60 = vector.shape_cast %59 : vector<8xf32> to vector<8x1xf32>
    %61 = arith.addf %58, %60 : vector<8x1xf32>
    %c1_36 = arith.constant 1 : index
    %c0_37 = arith.constant 0 : index
    %c0_38 = arith.constant 0 : index
    %62 = vector.load %arg8[%c1_36, %c0_37, %c0_38] : memref<4x8x1xf32, #tpu.memory_space<vmem>>, vector<1x8x1xf32>
    %63 = vector.shape_cast %62 : vector<1x8x1xf32> to vector<8x1xf32>
    %64 = vector.shape_cast %61 : vector<8x1xf32> to vector<1x8x1xf32>
    tpu.vector_store %arg8[%c1_36, %c0_37, %c0_38], %64 {strides = array<i32>} : memref<4x8x1xf32, #tpu.memory_space<vmem>>, vector<1x8x1xf32>,
    %c0_39 = arith.constant 0 : index
    %c8 = arith.constant 8 : index
    %65 = vector.load %arg9[%c0_39, %c8] : memref<8x32xf32, #tpu.memory_space<vmem>>, vector<8x8xf32>
    %66 = vector.broadcast %52 : vector<8x1xf32> to vector<8x8xf32>
    %67 = arith.mulf %66, %65 : vector<8x8xf32>
    %68 = arith.truncf %55 : vector<8x8xf32> to vector<8x8xbf16>
    %cst_40 = arith.constant dense<0.000000e+00> : vector<8x8xf32>
    %69 = tpu.matmul %68, %44, %cst_40 {dimension_numbers = #tpu.dot_dimension_numbers<[1], [0], [0], [1], [0, 0, 1, 1], [], []>} : vector<8x8xbf16>, vector<8x8xbf16>, vector<8x8xf32> -> vector<8x8xf32>
    %70 = arith.addf %67, %69 : vector<8x8xf32>
    %c0_41 = arith.constant 0 : index
    %c8_42 = arith.constant 8 : index
    %71 = vector.load %arg9[%c0_41, %c8_42] : memref<8x32xf32, #tpu.memory_space<vmem>>, vector<8x8xf32>
    tpu.vector_store %arg9[%c0_41, %c8_42], %70 {strides = array<i32>} : memref<8x32xf32, #tpu.memory_space<vmem>>, vector<8x8xf32>,
    %c1_43 = arith.constant 1 : index
    %c0_44 = arith.constant 0 : index
    %c0_45 = arith.constant 0 : index
    %72 = vector.load %arg7[%c1_43, %c0_44, %c0_45] : memref<4x8x1xf32, #tpu.memory_space<vmem>>, vector<1x8x1xf32>
    %73 = vector.shape_cast %72 : vector<1x8x1xf32> to vector<8x1xf32>
    %74 = vector.shape_cast %50 : vector<8x1xf32> to vector<1x8x1xf32>
    tpu.vector_store %arg7[%c1_43, %c0_44, %c0_45], %74 {strides = array<i32>} : memref<4x8x1xf32, #tpu.memory_space<vmem>>, vector<1x8x1xf32>,
    %75 = vector.extract_strided_slice %4 {offsets = [0, 16], sizes = [8, 8], strides = [1, 1]} : vector<8x32xbf16> to vector<8x8xbf16>
    %76 = vector.extract_strided_slice %6 {offsets = [0, 16], sizes = [8, 8], strides = [1, 1]} : vector<8x32xbf16> to vector<8x8xbf16>
    %77 = vector.extract_strided_slice %8 {offsets = [0, 16], sizes = [8, 8], strides = [1, 1]} : vector<8x32xbf16> to vector<8x8xbf16>
    %cst_46 = arith.constant dense<0.000000e+00> : vector<8x8xf32>
    %78 = tpu.matmul %75, %76, %cst_46 {dimension_numbers = #tpu.dot_dimension_numbers<[1], [1], [0], [0], [0, 0, 1, 0], [], []>} : vector<8x8xbf16>, vector<8x8xbf16>, vector<8x8xf32> -> vector<8x8xf32>
    %c2 = arith.constant 2 : index
    %c0_47 = arith.constant 0 : index
    %c0_48 = arith.constant 0 : index
    %79 = vector.load %arg7[%c2, %c0_47, %c0_48] : memref<4x8x1xf32, #tpu.memory_space<vmem>>, vector<1x8x1xf32>
    %80 = vector.shape_cast %79 : vector<1x8x1xf32> to vector<8x1xf32>
    %cst_49 = arith.constant dense<0xFF800000> : vector<8xf32>
    %81 = vector.multi_reduction <maximumf>, %78, %cst_49 [1] : vector<8x8xf32> to vector<8xf32>
    %82 = vector.shape_cast %81 : vector<8xf32> to vector<8x1xf32>
    %83 = arith.maximumf %80, %82 : vector<8x1xf32>
    %84 = arith.subf %80, %83 : vector<8x1xf32>
    %85 = math.exp %84 : vector<8x1xf32>
    %86 = vector.broadcast %83 : vector<8x1xf32> to vector<8x8xf32>
    %87 = arith.subf %78, %86 : vector<8x8xf32>
    %88 = math.exp %87 : vector<8x8xf32>
    %c2_50 = arith.constant 2 : index
    %c0_51 = arith.constant 0 : index
    %c0_52 = arith.constant 0 : index
    %89 = vector.load %arg8[%c2_50, %c0_51, %c0_52] : memref<4x8x1xf32, #tpu.memory_space<vmem>>, vector<1x8x1xf32>
    %90 = vector.shape_cast %89 : vector<1x8x1xf32> to vector<8x1xf32>
    %91 = arith.mulf %85, %90 : vector<8x1xf32>
    %cst_53 = arith.constant dense<0.000000e+00> : vector<8xf32>
    %92 = vector.multi_reduction <add>, %88, %cst_53 [1] : vector<8x8xf32> to vector<8xf32>
    %93 = vector.shape_cast %92 : vector<8xf32> to vector<8x1xf32>
    %94 = arith.addf %91, %93 : vector<8x1xf32>
    %c2_54 = arith.constant 2 : index
    %c0_55 = arith.constant 0 : index
    %c0_56 = arith.constant 0 : index
    %95 = vector.load %arg8[%c2_54, %c0_55, %c0_56] : memref<4x8x1xf32, #tpu.memory_space<vmem>>, vector<1x8x1xf32>
    %96 = vector.shape_cast %95 : vector<1x8x1xf32> to vector<8x1xf32>
    %97 = vector.shape_cast %94 : vector<8x1xf32> to vector<1x8x1xf32>
    tpu.vector_store %arg8[%c2_54, %c0_55, %c0_56], %97 {strides = array<i32>} : memref<4x8x1xf32, #tpu.memory_space<vmem>>, vector<1x8x1xf32>,
    %c0_57 = arith.constant 0 : index
    %c16 = arith.constant 16 : index
    %98 = vector.load %arg9[%c0_57, %c16] : memref<8x32xf32, #tpu.memory_space<vmem>>, vector<8x8xf32>
    %99 = vector.broadcast %85 : vector<8x1xf32> to vector<8x8xf32>
    %100 = arith.mulf %99, %98 : vector<8x8xf32>
    %101 = arith.truncf %88 : vector<8x8xf32> to vector<8x8xbf16>
    %cst_58 = arith.constant dense<0.000000e+00> : vector<8x8xf32>
    %102 = tpu.matmul %101, %77, %cst_58 {dimension_numbers = #tpu.dot_dimension_numbers<[1], [0], [0], [1], [0, 0, 1, 1], [], []>} : vector<8x8xbf16>, vector<8x8xbf16>, vector<8x8xf32> -> vector<8x8xf32>
    %103 = arith.addf %100, %102 : vector<8x8xf32>
    %c0_59 = arith.constant 0 : index
    %c16_60 = arith.constant 16 : index
    %104 = vector.load %arg9[%c0_59, %c16_60] : memref<8x32xf32, #tpu.memory_space<vmem>>, vector<8x8xf32>
    tpu.vector_store %arg9[%c0_59, %c16_60], %103 {strides = array<i32>} : memref<8x32xf32, #tpu.memory_space<vmem>>, vector<8x8xf32>,
    %c2_61 = arith.constant 2 : index
    %c0_62 = arith.constant 0 : index
    %c0_63 = arith.constant 0 : index
    %105 = vector.load %arg7[%c2_61, %c0_62, %c0_63] : memref<4x8x1xf32, #tpu.memory_space<vmem>>, vector<1x8x1xf32>
    %106 = vector.shape_cast %105 : vector<1x8x1xf32> to vector<8x1xf32>
    %107 = vector.shape_cast %83 : vector<8x1xf32> to vector<1x8x1xf32>
    tpu.vector_store %arg7[%c2_61, %c0_62, %c0_63], %107 {strides = array<i32>} : memref<4x8x1xf32, #tpu.memory_space<vmem>>, vector<1x8x1xf32>,
    %108 = vector.extract_strided_slice %4 {offsets = [0, 24], sizes = [8, 8], strides = [1, 1]} : vector<8x32xbf16> to vector<8x8xbf16>
    %109 = vector.extract_strided_slice %6 {offsets = [0, 24], sizes = [8, 8], strides = [1, 1]} : vector<8x32xbf16> to vector<8x8xbf16>
    %110 = vector.extract_strided_slice %8 {offsets = [0, 24], sizes = [8, 8], strides = [1, 1]} : vector<8x32xbf16> to vector<8x8xbf16>
    %cst_64 = arith.constant dense<0.000000e+00> : vector<8x8xf32>
    %111 = tpu.matmul %108, %109, %cst_64 {dimension_numbers = #tpu.dot_dimension_numbers<[1], [1], [0], [0], [0, 0, 1, 0], [], []>} : vector<8x8xbf16>, vector<8x8xbf16>, vector<8x8xf32> -> vector<8x8xf32>
    %c3 = arith.constant 3 : index
    %c0_65 = arith.constant 0 : index
    %c0_66 = arith.constant 0 : index
    %112 = vector.load %arg7[%c3, %c0_65, %c0_66] : memref<4x8x1xf32, #tpu.memory_space<vmem>>, vector<1x8x1xf32>
    %113 = vector.shape_cast %112 : vector<1x8x1xf32> to vector<8x1xf32>
    %cst_67 = arith.constant dense<0xFF800000> : vector<8xf32>
    %114 = vector.multi_reduction <maximumf>, %111, %cst_67 [1] : vector<8x8xf32> to vector<8xf32>
    %115 = vector.shape_cast %114 : vector<8xf32> to vector<8x1xf32>
    %116 = arith.maximumf %113, %115 : vector<8x1xf32>
    %117 = arith.subf %113, %116 : vector<8x1xf32>
    %118 = math.exp %117 : vector<8x1xf32>
    %119 = vector.broadcast %116 : vector<8x1xf32> to vector<8x8xf32>
    %120 = arith.subf %111, %119 : vector<8x8xf32>
    %121 = math.exp %120 : vector<8x8xf32>
    %c3_68 = arith.constant 3 : index
    %c0_69 = arith.constant 0 : index
    %c0_70 = arith.constant 0 : index
    %122 = vector.load %arg8[%c3_68, %c0_69, %c0_70] : memref<4x8x1xf32, #tpu.memory_space<vmem>>, vector<1x8x1xf32>
    %123 = vector.shape_cast %122 : vector<1x8x1xf32> to vector<8x1xf32>
    %124 = arith.mulf %118, %123 : vector<8x1xf32>
    %cst_71 = arith.constant dense<0.000000e+00> : vector<8xf32>
    %125 = vector.multi_reduction <add>, %121, %cst_71 [1] : vector<8x8xf32> to vector<8xf32>
    %126 = vector.shape_cast %125 : vector<8xf32> to vector<8x1xf32>
    %127 = arith.addf %124, %126 : vector<8x1xf32>
    %c3_72 = arith.constant 3 : index
    %c0_73 = arith.constant 0 : index
    %c0_74 = arith.constant 0 : index
    %128 = vector.load %arg8[%c3_72, %c0_73, %c0_74] : memref<4x8x1xf32, #tpu.memory_space<vmem>>, vector<1x8x1xf32>
    %129 = vector.shape_cast %128 : vector<1x8x1xf32> to vector<8x1xf32>
    %130 = vector.shape_cast %127 : vector<8x1xf32> to vector<1x8x1xf32>
    tpu.vector_store %arg8[%c3_72, %c0_73, %c0_74], %130 {strides = array<i32>} : memref<4x8x1xf32, #tpu.memory_space<vmem>>, vector<1x8x1xf32>,
    %c0_75 = arith.constant 0 : index
    %c24 = arith.constant 24 : index
    %131 = vector.load %arg9[%c0_75, %c24] : memref<8x32xf32, #tpu.memory_space<vmem>>, vector<8x8xf32>
    %132 = vector.broadcast %118 : vector<8x1xf32> to vector<8x8xf32>
    %133 = arith.mulf %132, %131 : vector<8x8xf32>
    %134 = arith.truncf %121 : vector<8x8xf32> to vector<8x8xbf16>
    %cst_76 = arith.constant dense<0.000000e+00> : vector<8x8xf32>
    %135 = tpu.matmul %134, %110, %cst_76 {dimension_numbers = #tpu.dot_dimension_numbers<[1], [0], [0], [1], [0, 0, 1, 1], [], []>} : vector<8x8xbf16>, vector<8x8xbf16>, vector<8x8xf32> -> vector<8x8xf32>
    %136 = arith.addf %133, %135 : vector<8x8xf32>
    %c0_77 = arith.constant 0 : index
    %c24_78 = arith.constant 24 : index
    %137 = vector.load %arg9[%c0_77, %c24_78] : memref<8x32xf32, #tpu.memory_space<vmem>>, vector<8x8xf32>
    tpu.vector_store %arg9[%c0_77, %c24_78], %136 {strides = array<i32>} : memref<8x32xf32, #tpu.memory_space<vmem>>, vector<8x8xf32>,
    %c3_79 = arith.constant 3 : index
    %c0_80 = arith.constant 0 : index
    %c0_81 = arith.constant 0 : index
    %138 = vector.load %arg7[%c3_79, %c0_80, %c0_81] : memref<4x8x1xf32, #tpu.memory_space<vmem>>, vector<1x8x1xf32>
    %139 = vector.shape_cast %138 : vector<1x8x1xf32> to vector<8x1xf32>
    %140 = vector.shape_cast %116 : vector<8x1xf32> to vector<1x8x1xf32>
    tpu.vector_store %arg7[%c3_79, %c0_80, %c0_81], %140 {strides = array<i32>} : memref<4x8x1xf32, #tpu.memory_space<vmem>>, vector<1x8x1xf32>,
    %c0_i32_82 = arith.constant 0 : i32
    %141 = arith.cmpi eq, %arg2, %c0_i32_82 : i32
    %142 = arith.extui %141 : i1 to i32
    %c0_i32_83 = arith.constant 0 : i32
    %143 = arith.cmpi ne, %142, %c0_i32_83 : i32
    scf.if %143 {
      %c0_84 = arith.constant 0 : index
      %c0_85 = arith.constant 0 : index
      %144 = vector.load %arg9[%c0_84, %c0_85] : memref<8x32xf32, #tpu.memory_space<vmem>>, vector<8x8xf32>
      %c0_86 = arith.constant 0 : index
      %c0_87 = arith.constant 0 : index
      %c0_88 = arith.constant 0 : index
      %145 = vector.load %arg8[%c0_86, %c0_87, %c0_88] : memref<4x8x1xf32, #tpu.memory_space<vmem>>, vector<1x8x1xf32>
      %146 = vector.shape_cast %145 : vector<1x8x1xf32> to vector<8x1xf32>
      %147 = tpu.reciprocal %146 : vector<8x1xf32> -> vector<8x1xf32>
      %148 = vector.broadcast %147 : vector<8x1xf32> to vector<8x8xf32>
      %149 = arith.mulf %144, %148 : vector<8x8xf32>
      %c0_89 = arith.constant 0 : index
      %c0_90 = arith.constant 0 : index
      %150 = vector.load %arg9[%c0_89, %c0_90] : memref<8x32xf32, #tpu.memory_space<vmem>>, vector<8x8xf32>
      tpu.vector_store %arg9[%c0_89, %c0_90], %149 {strides = array<i32>} : memref<8x32xf32, #tpu.memory_space<vmem>>, vector<8x8xf32>,
      %c0_91 = arith.constant 0 : index
      %c8_92 = arith.constant 8 : index
      %151 = vector.load %arg9[%c0_91, %c8_92] : memref<8x32xf32, #tpu.memory_space<vmem>>, vector<8x8xf32>
      %c1_93 = arith.constant 1 : index
      %c0_94 = arith.constant 0 : index
      %c0_95 = arith.constant 0 : index
      %152 = vector.load %arg8[%c1_93, %c0_94, %c0_95] : memref<4x8x1xf32, #tpu.memory_space<vmem>>, vector<1x8x1xf32>
      %153 = vector.shape_cast %152 : vector<1x8x1xf32> to vector<8x1xf32>
      %154 = tpu.reciprocal %153 : vector<8x1xf32> -> vector<8x1xf32>
      %155 = vector.broadcast %154 : vector<8x1xf32> to vector<8x8xf32>
      %156 = arith.mulf %151, %155 : vector<8x8xf32>
      %c0_96 = arith.constant 0 : index
      %c8_97 = arith.constant 8 : index
      %157 = vector.load %arg9[%c0_96, %c8_97] : memref<8x32xf32, #tpu.memory_space<vmem>>, vector<8x8xf32>
      tpu.vector_store %arg9[%c0_96, %c8_97], %156 {strides = array<i32>} : memref<8x32xf32, #tpu.memory_space<vmem>>, vector<8x8xf32>,
      %c0_98 = arith.constant 0 : index
      %c16_99 = arith.constant 16 : index
      %158 = vector.load %arg9[%c0_98, %c16_99] : memref<8x32xf32, #tpu.memory_space<vmem>>, vector<8x8xf32>
      %c2_100 = arith.constant 2 : index
      %c0_101 = arith.constant 0 : index
      %c0_102 = arith.constant 0 : index
      %159 = vector.load %arg8[%c2_100, %c0_101, %c0_102] : memref<4x8x1xf32, #tpu.memory_space<vmem>>, vector<1x8x1xf32>
      %160 = vector.shape_cast %159 : vector<1x8x1xf32> to vector<8x1xf32>
      %161 = tpu.reciprocal %160 : vector<8x1xf32> -> vector<8x1xf32>
      %162 = vector.broadcast %161 : vector<8x1xf32> to vector<8x8xf32>
      %163 = arith.mulf %158, %162 : vector<8x8xf32>
      %c0_103 = arith.constant 0 : index
      %c16_104 = arith.constant 16 : index
      %164 = vector.load %arg9[%c0_103, %c16_104] : memref<8x32xf32, #tpu.memory_space<vmem>>, vector<8x8xf32>
      tpu.vector_store %arg9[%c0_103, %c16_104], %163 {strides = array<i32>} : memref<8x32xf32, #tpu.memory_space<vmem>>, vector<8x8xf32>,
      %c0_105 = arith.constant 0 : index
      %c24_106 = arith.constant 24 : index
      %165 = vector.load %arg9[%c0_105, %c24_106] : memref<8x32xf32, #tpu.memory_space<vmem>>, vector<8x8xf32>
      %c3_107 = arith.constant 3 : index
      %c0_108 = arith.constant 0 : index
      %c0_109 = arith.constant 0 : index
      %166 = vector.load %arg8[%c3_107, %c0_108, %c0_109] : memref<4x8x1xf32, #tpu.memory_space<vmem>>, vector<1x8x1xf32>
      %167 = vector.shape_cast %166 : vector<1x8x1xf32> to vector<8x1xf32>
      %168 = tpu.reciprocal %167 : vector<8x1xf32> -> vector<8x1xf32>
      %169 = vector.broadcast %168 : vector<8x1xf32> to vector<8x8xf32>
      %170 = arith.mulf %165, %169 : vector<8x8xf32>
      %c0_110 = arith.constant 0 : index
      %c24_111 = arith.constant 24 : index
      %171 = vector.load %arg9[%c0_110, %c24_111] : memref<8x32xf32, #tpu.memory_space<vmem>>, vector<8x8xf32>
      tpu.vector_store %arg9[%c0_110, %c24_111], %170 {strides = array<i32>} : memref<8x32xf32, #tpu.memory_space<vmem>>, vector<8x8xf32>,
      %c0_112 = arith.constant 0 : index
      %c0_113 = arith.constant 0 : index
      %172 = vector.load %arg9[%c0_112, %c0_113] : memref<8x32xf32, #tpu.memory_space<vmem>>, vector<8x32xf32>
      %173 = vector.shape_cast %172 : vector<8x32xf32> to vector<1x8x32xf32>
      %174 = arith.truncf %173 : vector<1x8x32xf32> to vector<1x8x32xbf16>
      %c0_114 = arith.constant 0 : index
      %c0_115 = arith.constant 0 : index
      %c0_116 = arith.constant 0 : index
      %175 = vector.load %arg6[%c0_114, %c0_115, %c0_116] : memref<1x8x32xbf16, #tpu.memory_space<vmem>>, vector<1x8x32xbf16>
      tpu.vector_store %arg6[%c0_114, %c0_115, %c0_116], %174 {strides = array<i32>} : memref<1x8x32xbf16, #tpu.memory_space<vmem>>, vector<1x8x32xbf16>,
    } else {
    }
    return
  }
  func.func @transform_0(%arg0: i32, %arg1: i32, %arg2: i32) -> (i32, i32, i32) {
    %c0_i32 = arith.constant 0 : i32
    %c0_i32_0 = arith.constant 0 : i32
    return %arg0, %arg1, %c0_i32 : i32, i32, i32
  }
  func.func @transform_1(%arg0: i32, %arg1: i32, %arg2: i32) -> (i32, i32, i32) {
    %c0_i32 = arith.constant 0 : i32
    %c0_i32_0 = arith.constant 0 : i32
    return %arg0, %arg2, %c0_i32 : i32, i32, i32
  }
  func.func @transform_2(%arg0: i32, %arg1: i32, %arg2: i32) -> (i32, i32, i32) {
    %c0_i32 = arith.constant 0 : i32
    %c0_i32_0 = arith.constant 0 : i32
    return %arg0, %arg2, %c0_i32 : i32, i32, i32
  }
  func.func @transform_3(%arg0: i32, %arg1: i32, %arg2: i32) -> (i32, i32, i32) {
    %c0_i32 = arith.constant 0 : i32
    %c0_i32_0 = arith.constant 0 : i32
    return %arg0, %arg1, %c0_i32 : i32, i32, i32
  }
}

</mosaic_0001>

<llo_original>
// kernel: multi_head_attention.3
$region0: #{multi_head_attention.3}
  #allocation0 [shape = 'u32[]', space=smem, size = 0x4, offset = 0x4, fixed_abs, tag = 'smem constant byte address 0x4 - core index']
  #allocation1 [shape = 'u32[144,128]{1,0:T(1,128)}', space=vmem, size = 0x12000, scoped, tag = 'internal scratch']
  %s0 = inlined_call_operand.vmem [shape: f32[16,32], index: 0, kind: input, shape index: {}]
  %s1 = inlined_call_operand.vmem [shape: f32[16,32], index: 1, kind: input, shape index: {}]
  %s2 = inlined_call_operand.vmem [shape: f32[16,32], index: 2, kind: input, shape index: {}]
  %s3 = inlined_call_operand.vmem [shape: bf16[32,32], index: 3, kind: input, shape index: {}]
  %s4 = inlined_call_operand.vmem [shape: f32[1,32], index: 4, kind: input, shape index: {}]
  %s5 = inlined_call_operand.vmem [shape: bf16[32,32], index: 5, kind: input, shape index: {}]
  %s6 = inlined_call_operand.vmem [shape: f32[1,32], index: 6, kind: input, shape index: {}]
  %s7 = inlined_call_operand.vmem [shape: bf16[32,32], index: 7, kind: input, shape index: {}]
  %s8 = inlined_call_operand.vmem [shape: f32[1,32], index: 8, kind: input, shape index: {}]
  %s9 = inlined_call_operand.vmem [shape: bf16[16,32], index: 9, kind: output, shape index: {0}]
  %s10 = inlined_call_operand.vmem [shape: bf16[16,32], index: 10, kind: output, shape index: {1}]
  %s11 = inlined_call_operand.vmem [shape: bf16[16,32], index: 11, kind: output, shape index: {2}]
  %12 = xla_tuple %s9, %s10, %s11
  %s13 = sld [smem:[#allocation0]]
  $region62: #{multi_head_attention.3} parent=0
    _
  %s15 = ssub.s32 1, %s13
  %s16 = scalar_select 0, %s15, %s13
  // Predicated region
  $region2: #{multi_head_attention.3} parent=0 // pred_check
    _
  $region3: #{multi_head_attention.3} parent=0 // pred_check_branch
    %18 = sbr.rel (0) target = $region5
  $region4: #{multi_head_attention.3} parent=0 // pred_region
    _
  $region5: #{multi_head_attention.3} parent=0 // pred_fallthru
    _
  // Predicated region
  $region6: #{multi_head_attention.3} parent=0 // pred_check
    _
  $region7: #{multi_head_attention.3} parent=0 // pred_check_branch
    %20 = sbr.rel (0) target = $region9
  $region8: #{multi_head_attention.3} parent=0 // pred_region
    _
  $region9: #{multi_head_attention.3} parent=0 // pred_fallthru
    _
  // Predicated region
  $region10: #{multi_head_attention.3} parent=0 // pred_check
    _
  $region11: #{multi_head_attention.3} parent=0 // pred_check_branch
    %22 = sbr.rel (0) target = $region13
  $region12: #{multi_head_attention.3} parent=0 // pred_region
    _
  $region13: #{multi_head_attention.3} parent=0 // pred_fallthru
    _
  // Predicated region
  $region14: #{multi_head_attention.3} parent=0 // pred_check
    _
  $region15: #{multi_head_attention.3} parent=0 // pred_check_branch
    %24 = sbr.rel (0) target = $region17
  $region16: #{multi_head_attention.3} parent=0 // pred_region
    _
  $region17: #{multi_head_attention.3} parent=0 // pred_fallthru
    _
  // Predicated region
  $region18: #{multi_head_attention.3} parent=0 // pred_check
    _
  $region19: #{multi_head_attention.3} parent=0 // pred_check_branch
    %26 = sbr.rel (0) target = $region21
  $region20: #{multi_head_attention.3} parent=0 // pred_region
    _
  $region21: #{multi_head_attention.3} parent=0 // pred_fallthru
    _
  // Predicated region
  $region22: #{multi_head_attention.3} parent=0 // pred_check
    _
  $region23: #{multi_head_attention.3} parent=0 // pred_check_branch
    %28 = sbr.rel (0) target = $region25
  $region24: #{multi_head_attention.3} parent=0 // pred_region
    _
  $region25: #{multi_head_attention.3} parent=0 // pred_fallthru
    _
  // Predicated region
  $region26: #{multi_head_attention.3} parent=0 // pred_check
    _
  $region27: #{multi_head_attention.3} parent=0 // pred_check_branch
    %30 = sbr.rel (0) target = $region29
  $region28: #{multi_head_attention.3} parent=0 // pred_region
    _
  $region29: #{multi_head_attention.3} parent=0 // pred_fallthru
    _
  // Predicated region
  $region30: #{multi_head_attention.3} parent=0 // pred_check
    _
  $region31: #{multi_head_attention.3} parent=0 // pred_check_branch
    %32 = sbr.rel (0) target = $region33
  $region32: #{multi_head_attention.3} parent=0 // pred_region
    _
  $region33: #{multi_head_attention.3} parent=0 // pred_fallthru
    _
  // Predicated region
  $region34: #{multi_head_attention.3} parent=0 // pred_check
    _
  $region35: #{multi_head_attention.3} parent=0 // pred_check_branch
    %34 = sbr.rel (0) target = $region37
  $region36: #{multi_head_attention.3} parent=0 // pred_region
    _
  $region37: #{multi_head_attention.3} parent=0 // pred_fallthru
    _
  %v36 = vld [vmem:[%s0] sm:$0xff]
  %v37 = vld [vmem:[%s0 + $0x8] sm:$0xff]
  %v38 = vpack.c.bf16 %v37, %v36
  %v39 = vld [vmem:[%s3] sm:$0xf]
  %v40 = vld [vmem:[%s3 + $0x4] sm:$0xf]
  %v41 = vld [vmem:[%s3 + $0x8] sm:$0xf]
  %v42 = vld [vmem:[%s3 + $0xc] sm:$0xf]
  %v43 = vld [vmem:[%s4] sm:$0x1]
  %v45 = vlaneseq
  %v46 = vshrl.u32 %v45, 7
  %v47 = vsub.s32 0, %v46
  %v48 = vrot.slane %v43, %v47
  %v54 = vunpack.c.l.b16 %v39
  %v55 = vunpack.c.l.b16 %v40
  %v56 = vunpack.c.l.b16 %v41
  %v57 = vunpack.c.l.b16 %v42
  %v58 = vpack.c.b16 %v55, %v54
  %v59 = vpack.c.b16 %v57, %v56
  %vm62 = vcmask 261120
  %v64 = vsel %vm62, %v38, 0
  %66 = vmatprep.subr.bf16.mxu0 0
  %67 = vmatpush1.bf16.msra.mxu0 %v58
  %68 = vmatprep.subr.bf16.mxu0 0
  %69 = vmatpush1.bf16.msra.mxu0 %v59
  %70 = vmatprep.subr.bf16.mxu0 0
  %71 = vmatpush1.bf16.msra.mxu0 0
  %72 = vmatprep.subr.bf16.mxu0 0
  %73 = vmatpush1.bf16.msra.mxu0 0
  %74 = vmatprep.subr.bf16.mxu0 0
  %75 = vmatpush1.bf16.msra.mxu0 0
  %76 = vmatprep.subr.bf16.mxu0 0
  %77 = vmatpush1.bf16.msra.mxu0 0
  %78 = vmatprep.subr.bf16.mxu0 0
  %79 = vmatpush1.bf16.msra.mxu0 0
  %80 = vmatprep.subr.bf16.mxu0 0
  %81 = vmatpush1.bf16.msra.mxu0 0
  %82 = vmatprep.subr.bf16.mxu0 0
  %83 = vmatpush1.bf16.msra.mxu0 0
  %84 = vmatprep.subr.bf16.mxu0 0
  %85 = vmatpush1.bf16.msra.mxu0 0
  %86 = vmatprep.subr.bf16.mxu0 0
  %87 = vmatpush1.bf16.msra.mxu0 0
  %88 = vmatprep.subr.bf16.mxu0 0
  %89 = vmatpush1.bf16.msra.mxu0 0
  %90 = vmatprep.subr.bf16.mxu0 0
  %91 = vmatpush1.bf16.msra.mxu0 0
  %92 = vmatprep.subr.bf16.mxu0 0
  %93 = vmatpush1.bf16.msra.mxu0 0
  %94 = vmatprep.subr.bf16.mxu0 0
  %95 = vmatpush1.bf16.msra.mxu0 0
  %96 = vmatprep.subr.bf16.mxu0 0
  %97 = vmatpush1.bf16.msra.mxu0 0
  %98 = vmatprep.mubr.bf16.mxu0 0
  %99 = vmatmul.mubr.bf16.gmra.mrb[0].mxu0 %v64
  %v100 = vpop.f32.mrb[0].mxu0
  %v101 = vadd.f32 %v48, %v100
  %v102 = vpop.f32.mrb[0].mxu0
  %v103 = vpop.f32.mrb[0].mxu0
  %v104 = vadd.f32 %v48, %v103
  %v105 = vpop.f32.mrb[0].mxu0
  %106 = vdwg.mxu0
  %v107 = vpack.c.bf16 %v104, %v101
  %v109 = vunpack.c.l.b16 %v107
  %v110 = vunpack.c.h.b16 %v107
  %v111 = vpack.c.b16 %v109, %v109
  %v112 = vpack.c.b16 %v110, %v110
  %vm115 = vcmask 257024
  %116 = vst.msk [vmem:[%s9] sm:$0xf] %vm115, %v111
  %117 = vst.msk [vmem:[%s9 + $0x4] sm:$0xf] %vm115, %v112
  %v118 = vld [vmem:[%s1] sm:$0xff]
  %v119 = vld [vmem:[%s1 + $0x8] sm:$0xff]
  %v120 = vpack.c.bf16 %v119, %v118
  %v121 = vld [vmem:[%s5] sm:$0xf]
  %v122 = vld [vmem:[%s5 + $0x4] sm:$0xf]
  %v123 = vld [vmem:[%s5 + $0x8] sm:$0xf]
  %v124 = vld [vmem:[%s5 + $0xc] sm:$0xf]
  %v125 = vld [vmem:[%s6] sm:$0x1]
  %v127 = vlaneseq
  %v128 = vshrl.u32 %v127, 7
  %v129 = vsub.s32 0, %v128
  %v130 = vrot.slane %v125, %v129
  %v136 = vunpack.c.l.b16 %v121
  %v137 = vunpack.c.l.b16 %v122
  %v138 = vunpack.c.l.b16 %v123
  %v139 = vunpack.c.l.b16 %v124
  %v140 = vpack.c.b16 %v137, %v136
  %v141 = vpack.c.b16 %v139, %v138
  %v145 = vsel %vm62, %v120, 0
  %147 = vmatprep.subr.bf16.mxu0 0
  %148 = vmatpush1.bf16.msra.mxu0 %v140
  %149 = vmatprep.subr.bf16.mxu0 0
  %150 = vmatpush1.bf16.msra.mxu0 %v141
  %151 = vmatprep.subr.bf16.mxu0 0
  %152 = vmatpush1.bf16.msra.mxu0 0
  %153 = vmatprep.subr.bf16.mxu0 0
  %154 = vmatpush1.bf16.msra.mxu0 0
  %155 = vmatprep.subr.bf16.mxu0 0
  %156 = vmatpush1.bf16.msra.mxu0 0
  %157 = vmatprep.subr.bf16.mxu0 0
  %158 = vmatpush1.bf16.msra.mxu0 0
  %159 = vmatprep.subr.bf16.mxu0 0
  %160 = vmatpush1.bf16.msra.mxu0 0
  %161 = vmatprep.subr.bf16.mxu0 0
  %162 = vmatpush1.bf16.msra.mxu0 0
  %163 = vmatprep.subr.bf16.mxu0 0
  %164 = vmatpush1.bf16.msra.mxu0 0
  %165 = vmatprep.subr.bf16.mxu0 0
  %166 = vmatpush1.bf16.msra.mxu0 0
  %167 = vmatprep.subr.bf16.mxu0 0
  %168 = vmatpush1.bf16.msra.mxu0 0
  %169 = vmatprep.subr.bf16.mxu0 0
  %170 = vmatpush1.bf16.msra.mxu0 0
  %171 = vmatprep.subr.bf16.mxu0 0
  %172 = vmatpush1.bf16.msra.mxu0 0
  %173 = vmatprep.subr.bf16.mxu0 0
  %174 = vmatpush1.bf16.msra.mxu0 0
  %175 = vmatprep.subr.bf16.mxu0 0
  %176 = vmatpush1.bf16.msra.mxu0 0
  %177 = vmatprep.subr.bf16.mxu0 0
  %178 = vmatpush1.bf16.msra.mxu0 0
  %179 = vmatprep.mubr.bf16.mxu0 0
  %180 = vmatmul.mubr.bf16.gmra.mrb[0].mxu0 %v145
  %v181 = vpop.f32.mrb[0].mxu0
  %v182 = vadd.f32 %v130, %v181
  %v183 = vpop.f32.mrb[0].mxu0
  %v184 = vpop.f32.mrb[0].mxu0
  %v185 = vadd.f32 %v130, %v184
  %v186 = vpop.f32.mrb[0].mxu0
  %187 = vdwg.mxu0
  %v188 = vpack.c.bf16 %v185, %v182
  %v190 = vunpack.c.l.b16 %v188
  %v191 = vunpack.c.h.b16 %v188
  %v192 = vpack.c.b16 %v190, %v190
  %v193 = vpack.c.b16 %v191, %v191
  %196 = vst.msk [vmem:[%s10] sm:$0xf] %vm115, %v192
  %197 = vst.msk [vmem:[%s10 + $0x4] sm:$0xf] %vm115, %v193
  %v198 = vld [vmem:[%s2] sm:$0xff]
  %v199 = vld [vmem:[%s2 + $0x8] sm:$0xff]
  %v200 = vpack.c.bf16 %v199, %v198
  %v201 = vld [vmem:[%s7] sm:$0xf]
  %v202 = vld [vmem:[%s7 + $0x4] sm:$0xf]
  %v203 = vld [vmem:[%s7 + $0x8] sm:$0xf]
  %v204 = vld [vmem:[%s7 + $0xc] sm:$0xf]
  %v205 = vld [vmem:[%s8] sm:$0x1]
  %v207 = vlaneseq
  %v208 = vshrl.u32 %v207, 7
  %v209 = vsub.s32 0, %v208
  %v210 = vrot.slane %v205, %v209
  %v216 = vunpack.c.l.b16 %v201
  %v217 = vunpack.c.l.b16 %v202
  %v218 = vunpack.c.l.b16 %v203
  %v219 = vunpack.c.l.b16 %v204
  %v220 = vpack.c.b16 %v217, %v216
  %v221 = vpack.c.b16 %v219, %v218
  %v225 = vsel %vm62, %v200, 0
  %227 = vmatprep.subr.bf16.mxu0 0
  %228 = vmatpush1.bf16.msra.mxu0 %v220
  %229 = vmatprep.subr.bf16.mxu0 0
  %230 = vmatpush1.bf16.msra.mxu0 %v221
  %231 = vmatprep.subr.bf16.mxu0 0
  %232 = vmatpush1.bf16.msra.mxu0 0
  %233 = vmatprep.subr.bf16.mxu0 0
  %234 = vmatpush1.bf16.msra.mxu0 0
  %235 = vmatprep.subr.bf16.mxu0 0
  %236 = vmatpush1.bf16.msra.mxu0 0
  %237 = vmatprep.subr.bf16.mxu0 0
  %238 = vmatpush1.bf16.msra.mxu0 0
  %239 = vmatprep.subr.bf16.mxu0 0
  %240 = vmatpush1.bf16.msra.mxu0 0
  %241 = vmatprep.subr.bf16.mxu0 0
  %242 = vmatpush1.bf16.msra.mxu0 0
  %243 = vmatprep.subr.bf16.mxu0 0
  %244 = vmatpush1.bf16.msra.mxu0 0
  %245 = vmatprep.subr.bf16.mxu0 0
  %246 = vmatpush1.bf16.msra.mxu0 0
  %247 = vmatprep.subr.bf16.mxu0 0
  %248 = vmatpush1.bf16.msra.mxu0 0
  %249 = vmatprep.subr.bf16.mxu0 0
  %250 = vmatpush1.bf16.msra.mxu0 0
  %251 = vmatprep.subr.bf16.mxu0 0
  %252 = vmatpush1.bf16.msra.mxu0 0
  %253 = vmatprep.subr.bf16.mxu0 0
  %254 = vmatpush1.bf16.msra.mxu0 0
  %255 = vmatprep.subr.bf16.mxu0 0
  %256 = vmatpush1.bf16.msra.mxu0 0
  %257 = vmatprep.subr.bf16.mxu0 0
  %258 = vmatpush1.bf16.msra.mxu0 0
  %259 = vmatprep.mubr.bf16.mxu0 0
  %260 = vmatmul.mubr.bf16.gmra.mrb[0].mxu0 %v225
  %v261 = vpop.f32.mrb[0].mxu0
  %v262 = vadd.f32 %v210, %v261
  %v263 = vpop.f32.mrb[0].mxu0
  %v264 = vpop.f32.mrb[0].mxu0
  %v265 = vadd.f32 %v210, %v264
  %v266 = vpop.f32.mrb[0].mxu0
  %267 = vdwg.mxu0
  %v268 = vpack.c.bf16 %v265, %v262
  %v270 = vunpack.c.l.b16 %v268
  %v271 = vunpack.c.h.b16 %v268
  %v272 = vpack.c.b16 %v270, %v270
  %v273 = vpack.c.b16 %v271, %v271
  %276 = vst.msk [vmem:[%s11] sm:$0xf] %vm115, %v272
  %277 = vst.msk [vmem:[%s11 + $0x4] sm:$0xf] %vm115, %v273
  // Predicated region
  $region38: #{multi_head_attention.3} parent=0 // pred_check
    _
  $region39: #{multi_head_attention.3} parent=0 // pred_check_branch
    %279 = sbr.rel (0) target = $region41
  $region40: #{multi_head_attention.3} parent=0 // pred_region
    _
  $region41: #{multi_head_attention.3} parent=0 // pred_fallthru
    _
  // Predicated region
  $region42: #{multi_head_attention.3} parent=0 // pred_check
    _
  $region43: #{multi_head_attention.3} parent=0 // pred_check_branch
    %281 = sbr.rel (0) target = $region45
  $region44: #{multi_head_attention.3} parent=0 // pred_region
    _
  $region45: #{multi_head_attention.3} parent=0 // pred_fallthru
    _
  // Predicated region
  $region46: #{multi_head_attention.3} parent=0 // pred_check
    _
  $region47: #{multi_head_attention.3} parent=0 // pred_check_branch
    %283 = sbr.rel (0) target = $region49
  $region48: #{multi_head_attention.3} parent=0 // pred_region
    _
  $region49: #{multi_head_attention.3} parent=0 // pred_fallthru
    _
  // Predicated region
  $region50: #{multi_head_attention.3} parent=0 // pred_check
    _
  $region51: #{multi_head_attention.3} parent=0 // pred_check_branch
    %285 = sbr.rel (0) target = $region53
  $region52: #{multi_head_attention.3} parent=0 // pred_region
    _
  $region53: #{multi_head_attention.3} parent=0 // pred_fallthru
    _
  // Predicated region
  $region54: #{multi_head_attention.3} parent=0 // pred_check
    _
  $region55: #{multi_head_attention.3} parent=0 // pred_check_branch
    %287 = sbr.rel (0) target = $region57
  $region56: #{multi_head_attention.3} parent=0 // pred_region
    _
  $region57: #{multi_head_attention.3} parent=0 // pred_fallthru
    _
  // Predicated region
  $region58: #{multi_head_attention.3} parent=0 // pred_check
    _
  $region59: #{multi_head_attention.3} parent=0 // pred_check_branch
    %289 = sbr.rel (0) target = $region61
  $region60: #{multi_head_attention.3} parent=0 // pred_region
    _
  $region61: #{multi_head_attention.3} parent=0 // pred_fallthru
    _

// kernel: multi_head_attention.5
$region0: #{multi_head_attention.5}
  #allocation0 [shape = 'u32[]', space=smem, size = 0x4, offset = 0x4, fixed_abs, tag = 'smem constant byte address 0x4 - core index']
  #allocation1 [shape = 'u32[144,128]{1,0:T(1,128)}', space=vmem, size = 0x12000, scoped, tag = 'internal scratch']
  %s0 = inlined_call_operand.vmem [shape: bf16[16,32], index: 0, kind: input, shape index: {}]
  %s1 = inlined_call_operand.vmem [shape: bf16[32,32], index: 1, kind: input, shape index: {}]
  %s2 = inlined_call_operand.vmem [shape: f32[1,32], index: 2, kind: input, shape index: {}]
  %s3 = inlined_call_operand.hbm [shape: f32[16,32], index: 3, kind: output, shape index: {}]
  %s4 = sld [smem:[#allocation0]]
  $region22: #{multi_head_attention.5} parent=0
    _
  %s6 = ssub.s32 1, %s4
  %s7 = scalar_select 0, %s6, %s4
  $region1: #{multi_head_attention.5} parent=0
    #allocation2 [shape = 'u8[8192]{0}', space=vmem, size = 0x2000, scoped, tag = 'output window, operand 0, single buffered']
    #allocation3 [shape = 's32[1]{0}', space=sflag, size = 0x4, scoped, tag = 'scoped memory for multi_head_attention.5']
    %8 = vsyncpa [#allocation3], 0
    // Predicated region
    $region2: #{multi_head_attention.5} parent=1 // pred_check
      _
    $region3: #{multi_head_attention.5} parent=1 // pred_check_branch
      %10 = sbr.rel (0) target = $region5
    $region4: #{multi_head_attention.5} parent=1 // pred_region
      _
    $region5: #{multi_head_attention.5} parent=1 // pred_fallthru
      _
    // Predicated region
    $region6: #{multi_head_attention.5} parent=1 // pred_check
      _
    $region7: #{multi_head_attention.5} parent=1 // pred_check_branch
      %12 = sbr.rel (0) target = $region9
    $region8: #{multi_head_attention.5} parent=1 // pred_region
      _
    $region9: #{multi_head_attention.5} parent=1 // pred_fallthru
      _
    // Predicated region
    $region10: #{multi_head_attention.5} parent=1 // pred_check
      _
    $region11: #{multi_head_attention.5} parent=1 // pred_check_branch
      %14 = sbr.rel (0) target = $region13
    $region12: #{multi_head_attention.5} parent=1 // pred_region
      _
    $region13: #{multi_head_attention.5} parent=1 // pred_fallthru
      _
    %v16 = vld [vmem:[%s0] sm:$0xf]
    %v17 = vld [vmem:[%s0 + $0x4] sm:$0xf]
    %v18 = vld [vmem:[%s1] sm:$0xf]
    %v19 = vld [vmem:[%s1 + $0x4] sm:$0xf]
    %v20 = vld [vmem:[%s1 + $0x8] sm:$0xf]
    %v21 = vld [vmem:[%s1 + $0xc] sm:$0xf]
    %v22 = vld [vmem:[%s2] sm:$0x1]
    %v24 = vlaneseq
    %v25 = vshrl.u32 %v24, 7
    %v26 = vsub.s32 0, %v25
    %v27 = vrot.slane %v22, %v26
    %v31 = vunpack.c.l.b16 %v16
    %v32 = vunpack.c.l.b16 %v17
    %v33 = vpack.c.b16 %v32, %v31
    %v38 = vunpack.c.l.b16 %v18
    %v39 = vunpack.c.l.b16 %v19
    %v40 = vunpack.c.l.b16 %v20
    %v41 = vunpack.c.l.b16 %v21
    %v42 = vpack.c.b16 %v39, %v38
    %v43 = vpack.c.b16 %v41, %v40
    %vm46 = vcmask 261120
    %v48 = vsel %vm46, %v33, 0
    %50 = vmatprep.subr.bf16.mxu0 0
    %51 = vmatpush1.bf16.msra.mxu0 %v42
    %52 = vmatprep.subr.bf16.mxu0 0
    %53 = vmatpush1.bf16.msra.mxu0 %v43
    %54 = vmatprep.subr.bf16.mxu0 0
    %55 = vmatpush1.bf16.msra.mxu0 0
    %56 = vmatprep.subr.bf16.mxu0 0
    %57 = vmatpush1.bf16.msra.mxu0 0
    %58 = vmatprep.subr.bf16.mxu0 0
    %59 = vmatpush1.bf16.msra.mxu0 0
    %60 = vmatprep.subr.bf16.mxu0 0
    %61 = vmatpush1.bf16.msra.mxu0 0
    %62 = vmatprep.subr.bf16.mxu0 0
    %63 = vmatpush1.bf16.msra.mxu0 0
    %64 = vmatprep.subr.bf16.mxu0 0
    %65 = vmatpush1.bf16.msra.mxu0 0
    %66 = vmatprep.subr.bf16.mxu0 0
    %67 = vmatpush1.bf16.msra.mxu0 0
    %68 = vmatprep.subr.bf16.mxu0 0
    %69 = vmatpush1.bf16.msra.mxu0 0
    %70 = vmatprep.subr.bf16.mxu0 0
    %71 = vmatpush1.bf16.msra.mxu0 0
    %72 = vmatprep.subr.bf16.mxu0 0
    %73 = vmatpush1.bf16.msra.mxu0 0
    %74 = vmatprep.subr.bf16.mxu0 0
    %75 = vmatpush1.bf16.msra.mxu0 0
    %76 = vmatprep.subr.bf16.mxu0 0
    %77 = vmatpush1.bf16.msra.mxu0 0
    %78 = vmatprep.subr.bf16.mxu0 0
    %79 = vmatpush1.bf16.msra.mxu0 0
    %80 = vmatprep.subr.bf16.mxu0 0
    %81 = vmatpush1.bf16.msra.mxu0 0
    %82 = vmatprep.mubr.bf16.mxu0 0
    %83 = vmatmul.mubr.bf16.gmra.mrb[0].mxu0 %v48
    %v84 = vpop.f32.mrb[0].mxu0
    %v85 = vadd.f32 %v27, %v84
    %v86 = vpop.f32.mrb[0].mxu0
    %v87 = vpop.f32.mrb[0].mxu0
    %v88 = vadd.f32 %v27, %v87
    %v89 = vpop.f32.mrb[0].mxu0
    %90 = vdwg.mxu0
    %91 = vst.msk [vmem:[#allocation2] sm:$0xff] %vm46, %v85
    %92 = vst.msk [vmem:[#allocation2 + $0x8] sm:$0xff] %vm46, %v88
    // Predicated region
    $region14: #{multi_head_attention.5} parent=1 // pred_check
      _
    $region15: #{multi_head_attention.5} parent=1 // pred_check_branch
      %94 = sbr.rel (0) target = $region17
    $region16: #{multi_head_attention.5} parent=1 // pred_region
      %s96 = ssub.s32 256, 256
      %97 = vsyncadd [#allocation3], %s96
      %s98 = sshll.u32 [#allocation2], 4
      %s99 = int_to_ptr.vmem [resolvable:$true] %s98
      %104 = dma.vmem_to_hbm [thread:$0]  %s99, 256, %s3, [#allocation3], 128, 128, 8
    $region17: #{multi_head_attention.5} parent=1 // pred_fallthru
      _
    // Predicated region
    $region18: #{multi_head_attention.5} parent=1 // pred_check
      _
    $region19: #{multi_head_attention.5} parent=1 // pred_check_branch
      %106 = sbr.rel (0) target = $region21
    $region20: #{multi_head_attention.5} parent=1 // pred_region
      %107 = dma.done [#allocation3], 256
    $region21: #{multi_head_attention.5} parent=1 // pred_fallthru
      _
    %108 = vsyncpa [#allocation3], 1

// kernel: multi_head_attention.4
$region0: #{multi_head_attention.4}
  #allocation0 [shape = 'u32[]', space=smem, size = 0x4, offset = 0x4, fixed_abs, tag = 'smem constant byte address 0x4 - core index']
  #allocation1 [shape = 'u32[144,128]{1,0:T(1,128)}', space=vmem, size = 0x12000, scoped, tag = 'internal scratch']
  #allocation2 [shape = 'f32[4,8,1]{2,1,0:T(8,128)}', space=vmem, size = 0x4000, scoped, tag = 'scratch operand']
  #allocation3 [shape = 'f32[4,8,1]{2,1,0:T(8,128)}', space=vmem, size = 0x4000, scoped, tag = 'scratch operand']
  #allocation4 [shape = 'f32[8,32]{1,0:T(8,128)}', space=vmem, size = 0x1000, scoped, tag = 'scratch operand']
  %s0 = inlined_call_operand.vmem [shape: bf16[2,8,32], index: 0, kind: input, shape index: {}]
  %s1 = inlined_call_operand.vmem [shape: bf16[2,8,32], index: 1, kind: input, shape index: {}]
  %s2 = inlined_call_operand.vmem [shape: bf16[2,8,32], index: 2, kind: input, shape index: {}]
  %s3 = inlined_call_operand.vmem [shape: bf16[2,8,32], index: 3, kind: output, shape index: {}]
  %s4 = sld [smem:[#allocation0]]
  $region53: #{multi_head_attention.4} parent=0
    _
  %s6 = ssub.s32 1, %s4
  %s7 = scalar_select 0, %s6, %s4
  loop: start=0, step=1, limit=4
  $region2: #{multi_head_attention.4} parent=0 // loop_pre_header
    _
  $region3: #{multi_head_attention.4} parent=0 // loop_header
    %s9 = sphi 0, %s13
    %p10 = scmp.ge.s32.totalorder %s9, 4
    %s16 = sphi 0, %s35
    %s17 = sphi 0, %s31
    %s18 = sphi 0, %s27
    %s19 = sphi 0, %s16
    %s20 = sphi 0, %s17
    %s21 = sphi 0, %s18
    %s22 = sphi 0, %s19
    %s23 = sphi 0, %s20
    %s24 = sphi 0, %s21
    %s40 = sphi 0, %s42
    %s43 = sphi 0, %s40
    %s44 = sphi 0, %s43
    %s60 = sphi 0, %s44
    %s68 = sphi 0, %s70
    %s71 = sphi 0, %s68
    %s72 = sphi 0, %s71
    %s88 = sphi 0, %s72
    %s96 = sphi 0, %s98
    %s99 = sphi 0, %s96
    %s100 = sphi 0, %s99
    %s116 = sphi 0, %s100
    %s124 = sphi 0, %s126
    %s127 = sphi 0, %s124
    %s128 = sphi 0, %s127
    %s144 = sphi 0, %s128
  $region4: #{multi_head_attention.4} parent=0 // loop_header_branch
    %12 = sbr.rel (%p10) target = $region8
  $region5: #{multi_head_attention.4} parent=0 // loop_body
    %s14 = ssub.s32 %s9, 1
    %s15 = ssub.s32 %s9, 2
    %s25 = sadd.s32 1, %s18
    %p26 = scmp.ge.s32.totalorder %s25, 1
    %s27 = scalar_select %p26, 0, %s25
    %s28 = sadd.s32 1, %s17
    %s29 = scalar_select %p26, %s28, %s17
    %p30 = scmp.ge.s32.totalorder %s29, 1
    %s31 = scalar_select %p30, 0, %s29
    %s32 = sadd.s32 1, %s16
    %s33 = scalar_select %p30, %s32, %s16
    %p34 = scmp.ge.s32.totalorder %s33, 2
    %s35 = scalar_select %p34, 0, %s33
    %s36 = ssub.s32 %s16, %s35
    %s37 = ssub.s32 %s17, %s31
    %s38 = sor.u32 %s36, %s37
    %p39 = scmp.eq.s32.totalorder %s38, 0
    %s41 = sadd.s32 %s40, 1
    %s42 = scalar_select %p39, %s40, %s41
    %p45 = pneg %p39
    %p46 = scmp.eq.s32.totalorder %s9, 1
    %p47 = por %p45, %p46
    %p48 = scmp.ne.s32.totalorder %s40, %s43
    %p49 = scmp.eq.s32.totalorder %s9, 0
    %p50 = por %p48, %p49
    %p51 = scmp.ne.s32.totalorder %s40, %s43
    %p52 = scmp.eq.s32.totalorder %s14, 1
    %p53 = por %p51, %p52
    %p54 = scmp.ne.s32.totalorder %s43, %s44
    %p55 = scmp.eq.s32.totalorder %s14, 0
    %p56 = por %p54, %p55
    %p57 = scmp.ne.s32.totalorder %s43, %s44
    %p58 = scmp.eq.s32.totalorder %s15, 1
    %p59 = por %p57, %p58
    %p61 = scmp.ne.s32.totalorder %s44, %s60
    %p62 = scmp.eq.s32.totalorder %s15, 0
    %p63 = por %p61, %p62
    %s64 = ssub.s32 %s16, %s35
    %s65 = ssub.s32 %s18, %s27
    %s66 = sor.u32 %s64, %s65
    %p67 = scmp.eq.s32.totalorder %s66, 0
    %s69 = sadd.s32 %s68, 1
    %s70 = scalar_select %p67, %s68, %s69
    %p73 = pneg %p67
    %p74 = scmp.eq.s32.totalorder %s9, 1
    %p75 = por %p73, %p74
    %p76 = scmp.ne.s32.totalorder %s68, %s71
    %p77 = scmp.eq.s32.totalorder %s9, 0
    %p78 = por %p76, %p77
    %p79 = scmp.ne.s32.totalorder %s68, %s71
    %p80 = scmp.eq.s32.totalorder %s14, 1
    %p81 = por %p79, %p80
    %p82 = scmp.ne.s32.totalorder %s71, %s72
    %p83 = scmp.eq.s32.totalorder %s14, 0
    %p84 = por %p82, %p83
    %p85 = scmp.ne.s32.totalorder %s71, %s72
    %p86 = scmp.eq.s32.totalorder %s15, 1
    %p87 = por %p85, %p86
    %p89 = scmp.ne.s32.totalorder %s72, %s88
    %p90 = scmp.eq.s32.totalorder %s15, 0
    %p91 = por %p89, %p90
    %s92 = ssub.s32 %s16, %s35
    %s93 = ssub.s32 %s18, %s27
    %s94 = sor.u32 %s92, %s93
    %p95 = scmp.eq.s32.totalorder %s94, 0
    %s97 = sadd.s32 %s96, 1
    %s98 = scalar_select %p95, %s96, %s97
    %p101 = pneg %p95
    %p102 = scmp.eq.s32.totalorder %s9, 1
    %p103 = por %p101, %p102
    %p104 = scmp.ne.s32.totalorder %s96, %s99
    %p105 = scmp.eq.s32.totalorder %s9, 0
    %p106 = por %p104, %p105
    %p107 = scmp.ne.s32.totalorder %s96, %s99
    %p108 = scmp.eq.s32.totalorder %s14, 1
    %p109 = por %p107, %p108
    %p110 = scmp.ne.s32.totalorder %s99, %s100
    %p111 = scmp.eq.s32.totalorder %s14, 0
    %p112 = por %p110, %p111
    %p113 = scmp.ne.s32.totalorder %s99, %s100
    %p114 = scmp.eq.s32.totalorder %s15, 1
    %p115 = por %p113, %p114
    %p117 = scmp.ne.s32.totalorder %s100, %s116
    %p118 = scmp.eq.s32.totalorder %s15, 0
    %p119 = por %p117, %p118
    %s120 = ssub.s32 %s16, %s35
    %s121 = ssub.s32 %s17, %s31
    %s122 = sor.u32 %s120, %s121
    %p123 = scmp.eq.s32.totalorder %s122, 0
    %s125 = sadd.s32 %s124, 1
    %s126 = scalar_select %p123, %s124, %s125
    %p129 = pneg %p123
    %p130 = scmp.eq.s32.totalorder %s9, 1
    %p131 = por %p129, %p130
    %p132 = scmp.ne.s32.totalorder %s124, %s127
    %p133 = scmp.eq.s32.totalorder %s9, 0
    %p134 = por %p132, %p133
    %p135 = scmp.ne.s32.totalorder %s124, %s127
    %p136 = scmp.eq.s32.totalorder %s14, 1
    %p137 = por %p135, %p136
    %p138 = scmp.ne.s32.totalorder %s127, %s128
    %p139 = scmp.eq.s32.totalorder %s14, 0
    %p140 = por %p138, %p139
    %p141 = scmp.ne.s32.totalorder %s127, %s128
    %p142 = scmp.eq.s32.totalorder %s15, 1
    %p143 = por %p141, %p142
    %p145 = scmp.ne.s32.totalorder %s128, %s144
    %p146 = scmp.eq.s32.totalorder %s15, 0
    %p147 = por %p145, %p146
    %p148 = scmp.le.s32.totalorder 1, %s9
    %p149 = scmp.lt.s32.totalorder %s9, 3
    %p150 = pnand %p148, %p149
    %p151 = pneg %p150
    // Predicated region
    $region9: #{multi_head_attention.4} parent=5 // pred_check
      _
    $region10: #{multi_head_attention.4} parent=5 // pred_check_branch
      %153 = sbr.rel (%p150) target = $region12
    $region11: #{multi_head_attention.4} parent=5 // pred_region
      %s154 = ssub.s32 %s9, 1
    $region12: #{multi_head_attention.4} parent=5 // pred_fallthru
      _
    %p155 = scmp.lt.s32.totalorder %s9, 2
    // Predicated region
    $region13: #{multi_head_attention.4} parent=5 // pred_check
      %p156 = pneg %p155
    $region14: #{multi_head_attention.4} parent=5 // pred_check_branch
      %158 = sbr.rel (%p156) target = $region16
    $region15: #{multi_head_attention.4} parent=5 // pred_region
      // Predicated region
      $region17: #{multi_head_attention.4} parent=15 // pred_check
        %p159 = pneg %p50
      $region18: #{multi_head_attention.4} parent=15 // pred_check_branch
        %161 = sbr.rel (%p159) target = $region20
      $region19: #{multi_head_attention.4} parent=15 // pred_region
        %p162 = scmp.lt.s32.totalorder %s16, 1
        %s163 = scalar_select %p162, %s16, 1
        %p164 = scmp.lt.s32.totalorder %s17, 0
        %s165 = scalar_select %p164, %s17, 0
        %s166 = sadd.s32 %s165, %s163
        %s167 = smul.addr %s166, 4
        %s168 = scalar_lea.vmem %s0, %s167
      $region20: #{multi_head_attention.4} parent=15 // pred_fallthru
        _
      // Predicated region
      $region21: #{multi_head_attention.4} parent=15 // pred_check
        %p169 = pneg %p78
      $region22: #{multi_head_attention.4} parent=15 // pred_check_branch
        %171 = sbr.rel (%p169) target = $region24
      $region23: #{multi_head_attention.4} parent=15 // pred_region
        %p172 = scmp.lt.s32.totalorder %s16, 1
        %s173 = scalar_select %p172, %s16, 1
        %p174 = scmp.lt.s32.totalorder %s18, 0
        %s175 = scalar_select %p174, %s18, 0
        %s176 = sadd.s32 %s175, %s173
        %s177 = smul.addr %s176, 4
        %s178 = scalar_lea.vmem %s1, %s177
      $region24: #{multi_head_attention.4} parent=15 // pred_fallthru
        _
      // Predicated region
      $region25: #{multi_head_attention.4} parent=15 // pred_check
        %p179 = pneg %p106
      $region26: #{multi_head_attention.4} parent=15 // pred_check_branch
        %181 = sbr.rel (%p179) target = $region28
      $region27: #{multi_head_attention.4} parent=15 // pred_region
        %p182 = scmp.lt.s32.totalorder %s16, 1
        %s183 = scalar_select %p182, %s16, 1
        %p184 = scmp.lt.s32.totalorder %s18, 0
        %s185 = scalar_select %p184, %s18, 0
        %s186 = sadd.s32 %s185, %s183
        %s187 = smul.addr %s186, 4
        %s188 = scalar_lea.vmem %s2, %s187
      $region28: #{multi_head_attention.4} parent=15 // pred_fallthru
        _
    $region16: #{multi_head_attention.4} parent=5 // pred_fallthru
      _
    %p189 = scmp.le.s32.totalorder 1, %s9
    %p190 = scmp.lt.s32.totalorder %s9, 3
    %p191 = pnand %p189, %p190
    %p192 = pneg %p191
    // Predicated region
    $region29: #{multi_head_attention.4} parent=5 // pred_check
      _
    $region30: #{multi_head_attention.4} parent=5 // pred_check_branch
      %194 = sbr.rel (%p191) target = $region32
    $region31: #{multi_head_attention.4} parent=5 // pred_region
      %s195 = ssub.s32 %s9, 1
      %p196 = scmp.lt.s32.totalorder %s19, 1
      %s197 = scalar_select %p196, %s19, 1
      %p198 = scmp.lt.s32.totalorder %s20, 0
      %s199 = scalar_select %p198, %s20, 0
      %s200 = sadd.s32 %s199, %s197
      %s201 = smul.addr %s200, 4
      %s202 = scalar_lea.vmem %s0, %s201
      %p203 = pneg %p56
      %p204 = pneg %p53
      %p205 = scmp.lt.s32.totalorder %s19, 1
      %s206 = scalar_select %p205, %s19, 1
      %p207 = scmp.lt.s32.totalorder %s21, 0
      %s208 = scalar_select %p207, %s21, 0
      %s209 = sadd.s32 %s208, %s206
      %s210 = smul.addr %s209, 4
      %s211 = scalar_lea.vmem %s1, %s210
      %p212 = pneg %p84
      %p213 = pneg %p81
      %p214 = scmp.lt.s32.totalorder %s19, 1
      %s215 = scalar_select %p214, %s19, 1
      %p216 = scmp.lt.s32.totalorder %s21, 0
      %s217 = scalar_select %p216, %s21, 0
      %s218 = sadd.s32 %s217, %s215
      %s219 = smul.addr %s218, 4
      %s220 = scalar_lea.vmem %s2, %s219
      %p221 = pneg %p112
      %p222 = pneg %p109
      %p223 = pneg %p140
      %p224 = pneg %p137
      %p225 = scmp.lt.s32.totalorder %s19, 1
      %s226 = scalar_select %p225, %s19, 1
      %p227 = scmp.lt.s32.totalorder %s20, 0
      %s228 = scalar_select %p227, %s20, 0
      %s229 = sadd.s32 %s228, %s226
      %s230 = smul.addr %s229, 4
      %s231 = scalar_lea.vmem %s3, %s230
      %p232 = scmp.lt.s32.totalorder %s19, 1
      %s233 = scalar_select %p232, %s19, 1
      %p234 = scmp.lt.s32.totalorder %s20, 0
      %s235 = scalar_select %p234, %s20, 0
      %s236 = sadd.s32 %s235, %s233
      %s237 = smul.addr %s236, 4
      %s238 = scalar_lea.vmem %s0, %s237
      %p239 = scmp.lt.s32.totalorder %s19, 1
      %s240 = scalar_select %p239, %s19, 1
      %p241 = scmp.lt.s32.totalorder %s21, 0
      %s242 = scalar_select %p241, %s21, 0
      %s243 = sadd.s32 %s242, %s240
      %s244 = smul.addr %s243, 4
      %s245 = scalar_lea.vmem %s1, %s244
      %p246 = scmp.lt.s32.totalorder %s19, 1
      %s247 = scalar_select %p246, %s19, 1
      %p248 = scmp.lt.s32.totalorder %s21, 0
      %s249 = scalar_select %p248, %s21, 0
      %s250 = sadd.s32 %s249, %s247
      %s251 = smul.addr %s250, 4
      %s252 = scalar_lea.vmem %s2, %s251
      %p253 = scmp.lt.s32.totalorder %s19, 1
      %s254 = scalar_select %p253, %s19, 1
      %p255 = scmp.lt.s32.totalorder %s20, 0
      %s256 = scalar_select %p255, %s20, 0
      %s257 = sadd.s32 %s256, %s254
      %s258 = smul.addr %s257, 4
      %s259 = scalar_lea.vmem %s3, %s258
      %p261 = scmp.eq.s32.totalorder %s21, 0
      // Predicated region
      $region33: #{multi_head_attention.4} parent=31 // pred_check
        %p262 = pneg %p261
      $region34: #{multi_head_attention.4} parent=31 // pred_check_branch
        %264 = sbr.rel (%p262) target = $region36
      $region35: #{multi_head_attention.4} parent=31 // pred_region
        %vm265 = vcmask 7168
        %266 = vst.msk [vmem:[#allocation2] sm:$0xff] %vm265, -inf
        %267 = vst.msk [vmem:[#allocation2 + $0x8] sm:$0xff] %vm265, -inf
        %268 = vst.msk [vmem:[#allocation2 + $0x10] sm:$0xff] %vm265, -inf
        %269 = vst.msk [vmem:[#allocation2 + $0x18] sm:$0xff] %vm265, -inf
        %270 = vst.msk [vmem:[#allocation3] sm:$0xff] %vm265, 0.0
        %271 = vst.msk [vmem:[#allocation3 + $0x8] sm:$0xff] %vm265, 0.0
        %272 = vst.msk [vmem:[#allocation3 + $0x10] sm:$0xff] %vm265, 0.0
        %273 = vst.msk [vmem:[#allocation3 + $0x18] sm:$0xff] %vm265, 0.0
        %vm274 = vcmask 261120
        %275 = vst.msk [vmem:[#allocation4] sm:$0xff] %vm274, 0.0
      $region36: #{multi_head_attention.4} parent=31 // pred_fallthru
        _
      %v276 = vld [vmem:[%s238] sm:$0xf]
      %v277 = vld [vmem:[%s245] sm:$0xf]
      %v278 = vld [vmem:[%s252] sm:$0xf]
      %vm279 = vcmask 64512
      %v281 = vsel %vm279, %v276, 0
      %v284 = vsel %vm279, %v277, 0
      %286 = vmatprep.subr.bf16.mxu0 0
      %287 = vmatpush1.bf16.xpose.msra.mxu0 %v284
      %288 = vmatprep.subr.bf16.mxu0 0
      %289 = vmatpush1.bf16.xpose.msra.mxu0 0
      %290 = vmatprep.subr.bf16.mxu0 0
      %291 = vmatpush1.bf16.xpose.msra.mxu0 0
      %292 = vmatprep.subr.bf16.mxu0 0
      %293 = vmatpush1.bf16.xpose.msra.mxu0 0
      %294 = vmatprep.subr.bf16.mxu0 0
      %295 = vmatpush1.bf16.xpose.msra.mxu0 0
      %296 = vmatprep.subr.bf16.mxu0 0
      %297 = vmatpush1.bf16.xpose.msra.mxu0 0
      %298 = vmatprep.subr.bf16.mxu0 0
      %299 = vmatpush1.bf16.xpose.msra.mxu0 0
      %300 = vmatprep.subr.bf16.mxu0 0
      %301 = vmatpush1.bf16.xpose.msra.mxu0 0
      %302 = vmatprep.subr.bf16.mxu0 0
      %303 = vmatpush1.bf16.xpose.msra.mxu0 0
      %304 = vmatprep.subr.bf16.mxu0 0
      %305 = vmatpush1.bf16.xpose.msra.mxu0 0
      %306 = vmatprep.subr.bf16.mxu0 0
      %307 = vmatpush1.bf16.xpose.msra.mxu0 0
      %308 = vmatprep.subr.bf16.mxu0 0
      %309 = vmatpush1.bf16.xpose.msra.mxu0 0
      %310 = vmatprep.subr.bf16.mxu0 0
      %311 = vmatpush1.bf16.xpose.msra.mxu0 0
      %312 = vmatprep.subr.bf16.mxu0 0
      %313 = vmatpush1.bf16.xpose.msra.mxu0 0
      %314 = vmatprep.subr.bf16.mxu0 0
      %315 = vmatpush1.bf16.xpose.msra.mxu0 0
      %316 = vmatprep.subr.bf16.mxu0 0
      %317 = vmatpush1.bf16.xpose.msra.mxu0 0
      %318 = vmatprep.mubr.bf16.mxu0 0
      %319 = vmatmul.mubr.bf16.gmra.mrb[0].mxu0 %v281
      %v320 = vpop.f32.mrb[0].mxu0
      %v321 = vadd.f32 0.0, %v320
      %v322 = vpop.f32.mrb[0].mxu0
      %v323 = vpop.f32.mrb[0].mxu0
      %v324 = vpop.f32.mrb[0].mxu0
      %325 = vdwg.mxu0
      %v326 = vld [vmem:[#allocation2] sm:$0xff]
      %v327 = vsel %vm279, %v321, -inf
      %328 = vmax.xlane.f32.xlu0 %v327
      %v329 = vpop.xlane.xlu0 %328
      %v330 = vmax.f32 %v326, %v329
      %v331 = vsub.f32 %v326, %v330
      %v332 = vmul.f32 %v331, 1.442695
      %v333 = vpow.pop %v332
      %335 = vset.pattern.permute.xlu0 0
      %336 = vperm.xlu0 %335, %v330
      %v337 = vpop.permute.xlu0 %336
      %v339 = vsub.f32 %v321, %v337
      %v340 = vmul.f32 %v339, 1.442695
      %v341 = vpow.pop %v340
      %v342 = vld [vmem:[#allocation3] sm:$0xff]
      %v343 = vmul.f32 %v333, %v342
      %v344 = vsel %vm279, %v341, 0.0
      %345 = vadd.xlane.f32.xlu0 %v344
      %v346 = vpop.xlane.xlu0 %345
      %v347 = vadd.f32 %v343, %v346
      %vm348 = vcmask 7168
      %349 = vst.msk [vmem:[#allocation3] sm:$0xff] %vm348, %v347
      %v350 = vld [vmem:[#allocation4] sm:$0xff]
      %352 = vset.pattern.permute.xlu0 0
      %353 = vperm.xlu0 %352, %v333
      %v354 = vpop.permute.xlu0 %353
      %v356 = vmul.f32 %v354, %v350
      %v357 = vpack.c.bf16 %v341, %v341
      %v359 = vsel %vm279, %v357, 0
      %vm361 = vcmask 1043456
      %v363 = vsel %vm361, %v278, 0
      %365 = vmatprep.subr.bf16.mxu0 0
      %366 = vmatpush1.bf16.msra.mxu0 %v363
      %367 = vmatprep.subr.bf16.mxu0 0
      %368 = vmatpush1.bf16.msra.mxu0 0
      %369 = vmatprep.subr.bf16.mxu0 0
      %370 = vmatpush1.bf16.msra.mxu0 0
      %371 = vmatprep.subr.bf16.mxu0 0
      %372 = vmatpush1.bf16.msra.mxu0 0
      %373 = vmatprep.subr.bf16.mxu0 0
      %374 = vmatpush1.bf16.msra.mxu0 0
      %375 = vmatprep.subr.bf16.mxu0 0
      %376 = vmatpush1.bf16.msra.mxu0 0
      %377 = vmatprep.subr.bf16.mxu0 0
      %378 = vmatpush1.bf16.msra.mxu0 0
      %379 = vmatprep.subr.bf16.mxu0 0
      %380 = vmatpush1.bf16.msra.mxu0 0
      %381 = vmatprep.subr.bf16.mxu0 0
      %382 = vmatpush1.bf16.msra.mxu0 0
      %383 = vmatprep.subr.bf16.mxu0 0
      %384 = vmatpush1.bf16.msra.mxu0 0
      %385 = vmatprep.subr.bf16.mxu0 0
      %386 = vmatpush1.bf16.msra.mxu0 0
      %387 = vmatprep.subr.bf16.mxu0 0
      %388 = vmatpush1.bf16.msra.mxu0 0
      %389 = vmatprep.subr.bf16.mxu0 0
      %390 = vmatpush1.bf16.msra.mxu0 0
      %391 = vmatprep.subr.bf16.mxu0 0
      %392 = vmatpush1.bf16.msra.mxu0 0
      %393 = vmatprep.subr.bf16.mxu0 0
      %394 = vmatpush1.bf16.msra.mxu0 0
      %395 = vmatprep.subr.bf16.mxu0 0
      %396 = vmatpush1.bf16.msra.mxu0 0
      %397 = vmatprep.mubr.bf16.mxu0 0
      %398 = vmatmul.mubr.bf16.gmra.mrb[0].mxu0 %v359
      %v399 = vpop.f32.mrb[0].mxu0
      %v400 = vadd.f32 0.0, %v399
      %v401 = vpop.f32.mrb[0].mxu0
      %v402 = vpop.f32.mrb[0].mxu0
      %v403 = vpop.f32.mrb[0].mxu0
      %404 = vdwg.mxu0
      %v405 = vadd.f32 %v356, %v400
      %406 = vst.msk [vmem:[#allocation4] sm:$0xff] %vm279, %v405
      %407 = vst.msk [vmem:[#allocation2] sm:$0xff] %vm348, %v330
      %v409 = vunpack.c.l.b16 %v276
      %v410 = vpack.c.b16 %v409, %v409
      %411 = vrot.lane.b32.xlu0 %v410, 120
      %v412 = vpop.permute.xlu0 %411
      %v414 = vunpack.c.l.b16 %v277
      %v415 = vpack.c.b16 %v414, %v414
      %416 = vrot.lane.b32.xlu0 %v415, 120
      %v417 = vpop.permute.xlu0 %416
      %v419 = vsel %vm279, %v412, 0
      %v422 = vsel %vm279, %v417, 0
      %424 = vmatprep.subr.bf16.mxu0 0
      %425 = vmatpush1.bf16.xpose.msra.mxu0 %v422
      %426 = vmatprep.subr.bf16.mxu0 0
      %427 = vmatpush1.bf16.xpose.msra.mxu0 0
      %428 = vmatprep.subr.bf16.mxu0 0
      %429 = vmatpush1.bf16.xpose.msra.mxu0 0
      %430 = vmatprep.subr.bf16.mxu0 0
      %431 = vmatpush1.bf16.xpose.msra.mxu0 0
      %432 = vmatprep.subr.bf16.mxu0 0
      %433 = vmatpush1.bf16.xpose.msra.mxu0 0
      %434 = vmatprep.subr.bf16.mxu0 0
      %435 = vmatpush1.bf16.xpose.msra.mxu0 0
      %436 = vmatprep.subr.bf16.mxu0 0
      %437 = vmatpush1.bf16.xpose.msra.mxu0 0
      %438 = vmatprep.subr.bf16.mxu0 0
      %439 = vmatpush1.bf16.xpose.msra.mxu0 0
      %440 = vmatprep.subr.bf16.mxu0 0
      %441 = vmatpush1.bf16.xpose.msra.mxu0 0
      %442 = vmatprep.subr.bf16.mxu0 0
      %443 = vmatpush1.bf16.xpose.msra.mxu0 0
      %444 = vmatprep.subr.bf16.mxu0 0
      %445 = vmatpush1.bf16.xpose.msra.mxu0 0
      %446 = vmatprep.subr.bf16.mxu0 0
      %447 = vmatpush1.bf16.xpose.msra.mxu0 0
      %448 = vmatprep.subr.bf16.mxu0 0
      %449 = vmatpush1.bf16.xpose.msra.mxu0 0
      %450 = vmatprep.subr.bf16.mxu0 0
      %451 = vmatpush1.bf16.xpose.msra.mxu0 0
      %452 = vmatprep.subr.bf16.mxu0 0
      %453 = vmatpush1.bf16.xpose.msra.mxu0 0
      %454 = vmatprep.subr.bf16.mxu0 0
      %455 = vmatpush1.bf16.xpose.msra.mxu0 0
      %456 = vmatprep.mubr.bf16.mxu0 0
      %457 = vmatmul.mubr.bf16.gmra.mrb[0].mxu0 %v419
      %v458 = vpop.f32.mrb[0].mxu0
      %v459 = vadd.f32 0.0, %v458
      %v460 = vpop.f32.mrb[0].mxu0
      %v461 = vpop.f32.mrb[0].mxu0
      %v462 = vpop.f32.mrb[0].mxu0
      %463 = vdwg.mxu0
      %s464 = scalar_lea.vmem [#allocation2], 8
      %v465 = vld [vmem:[%s464] sm:$0xff]
      %v466 = vsel %vm279, %v459, -inf
      %467 = vmax.xlane.f32.xlu0 %v466
      %v468 = vpop.xlane.xlu0 %467
      %v469 = vmax.f32 %v465, %v468
      %v470 = vsub.f32 %v465, %v469
      %v471 = vmul.f32 %v470, 1.442695
      %v472 = vpow.pop %v471
      %474 = vset.pattern.permute.xlu0 0
      %475 = vperm.xlu0 %474, %v469
      %v476 = vpop.permute.xlu0 %475
      %v478 = vsub.f32 %v459, %v476
      %v479 = vmul.f32 %v478, 1.442695
      %v480 = vpow.pop %v479
      %s481 = scalar_lea.vmem [#allocation3], 8
      %v482 = vld [vmem:[%s481] sm:$0xff]
      %v483 = vmul.f32 %v472, %v482
      %v484 = vsel %vm279, %v480, 0.0
      %485 = vadd.xlane.f32.xlu0 %v484
      %v486 = vpop.xlane.xlu0 %485
      %v487 = vadd.f32 %v483, %v486
      %488 = vst.msk [vmem:[%s481] sm:$0xff] %vm348, %v487
      %v489 = vld [vmem:[#allocation4] sm:$0xff]
      %491 = vset.pattern.permute.xlu0 0
      %492 = vperm.xlu0 %491, %v472
      %v493 = vpop.permute.xlu0 %492
      %v495 = vmul.f32 %v493, %v489
      %v496 = vpack.c.bf16 %v480, %v480
      %v498 = vunpack.c.l.b16 %v278
      %v499 = vpack.c.b16 %v498, %v498
      %500 = vrot.lane.b32.xlu0 %v499, 120
      %v501 = vpop.permute.xlu0 %500
      %v503 = vsel %vm279, %v496, 0
      %v506 = vsel %vm361, %v501, 0
      %508 = vmatprep.subr.bf16.mxu0 0
      %509 = vmatpush1.bf16.msra.mxu0 %v506
      %510 = vmatprep.subr.bf16.mxu0 0
      %511 = vmatpush1.bf16.msra.mxu0 0
      %512 = vmatprep.subr.bf16.mxu0 0
      %513 = vmatpush1.bf16.msra.mxu0 0
      %514 = vmatprep.subr.bf16.mxu0 0
      %515 = vmatpush1.bf16.msra.mxu0 0
      %516 = vmatprep.subr.bf16.mxu0 0
      %517 = vmatpush1.bf16.msra.mxu0 0
      %518 = vmatprep.subr.bf16.mxu0 0
      %519 = vmatpush1.bf16.msra.mxu0 0
      %520 = vmatprep.subr.bf16.mxu0 0
      %521 = vmatpush1.bf16.msra.mxu0 0
      %522 = vmatprep.subr.bf16.mxu0 0
      %523 = vmatpush1.bf16.msra.mxu0 0
      %524 = vmatprep.subr.bf16.mxu0 0
      %525 = vmatpush1.bf16.msra.mxu0 0
      %526 = vmatprep.subr.bf16.mxu0 0
      %527 = vmatpush1.bf16.msra.mxu0 0
      %528 = vmatprep.subr.bf16.mxu0 0
      %529 = vmatpush1.bf16.msra.mxu0 0
      %530 = vmatprep.subr.bf16.mxu0 0
      %531 = vmatpush1.bf16.msra.mxu0 0
      %532 = vmatprep.subr.bf16.mxu0 0
      %533 = vmatpush1.bf16.msra.mxu0 0
      %534 = vmatprep.subr.bf16.mxu0 0
      %535 = vmatpush1.bf16.msra.mxu0 0
      %536 = vmatprep.subr.bf16.mxu0 0
      %537 = vmatpush1.bf16.msra.mxu0 0
      %538 = vmatprep.subr.bf16.mxu0 0
      %539 = vmatpush1.bf16.msra.mxu0 0
      %540 = vmatprep.mubr.bf16.mxu0 0
      %541 = vmatmul.mubr.bf16.gmra.mrb[0].mxu0 %v503
      %v542 = vpop.f32.mrb[0].mxu0
      %v543 = vadd.f32 0.0, %v542
      %v544 = vpop.f32.mrb[0].mxu0
      %v545 = vpop.f32.mrb[0].mxu0
      %v546 = vpop.f32.mrb[0].mxu0
      %547 = vdwg.mxu0
      %549 = vrot.lane.b32.xlu0 %v543, 8
      %v550 = vpop.permute.xlu0 %549
      %v552 = vadd.f32 %v495, %v550
      %vm553 = vcmask 130112
      %554 = vst.msk [vmem:[#allocation4] sm:$0xff] %vm553, %v552
      %555 = vst.msk [vmem:[%s464] sm:$0xff] %vm348, %v469
      %556 = vrot.lane.b32.xlu0 %v410, 112
      %v557 = vpop.permute.xlu0 %556
      %558 = vrot.lane.b32.xlu0 %v415, 112
      %v559 = vpop.permute.xlu0 %558
      %v561 = vsel %vm279, %v557, 0
      %v564 = vsel %vm279, %v559, 0
      %566 = vmatprep.subr.bf16.mxu0 0
      %567 = vmatpush1.bf16.xpose.msra.mxu0 %v564
      %568 = vmatprep.subr.bf16.mxu0 0
      %569 = vmatpush1.bf16.xpose.msra.mxu0 0
      %570 = vmatprep.subr.bf16.mxu0 0
      %571 = vmatpush1.bf16.xpose.msra.mxu0 0
      %572 = vmatprep.subr.bf16.mxu0 0
      %573 = vmatpush1.bf16.xpose.msra.mxu0 0
      %574 = vmatprep.subr.bf16.mxu0 0
      %575 = vmatpush1.bf16.xpose.msra.mxu0 0
      %576 = vmatprep.subr.bf16.mxu0 0
      %577 = vmatpush1.bf16.xpose.msra.mxu0 0
      %578 = vmatprep.subr.bf16.mxu0 0
      %579 = vmatpush1.bf16.xpose.msra.mxu0 0
      %580 = vmatprep.subr.bf16.mxu0 0
      %581 = vmatpush1.bf16.xpose.msra.mxu0 0
      %582 = vmatprep.subr.bf16.mxu0 0
      %583 = vmatpush1.bf16.xpose.msra.mxu0 0
      %584 = vmatprep.subr.bf16.mxu0 0
      %585 = vmatpush1.bf16.xpose.msra.mxu0 0
      %586 = vmatprep.subr.bf16.mxu0 0
      %587 = vmatpush1.bf16.xpose.msra.mxu0 0
      %588 = vmatprep.subr.bf16.mxu0 0
      %589 = vmatpush1.bf16.xpose.msra.mxu0 0
      %590 = vmatprep.subr.bf16.mxu0 0
      %591 = vmatpush1.bf16.xpose.msra.mxu0 0
      %592 = vmatprep.subr.bf16.mxu0 0
      %593 = vmatpush1.bf16.xpose.msra.mxu0 0
      %594 = vmatprep.subr.bf16.mxu0 0
      %595 = vmatpush1.bf16.xpose.msra.mxu0 0
      %596 = vmatprep.subr.bf16.mxu0 0
      %597 = vmatpush1.bf16.xpose.msra.mxu0 0
      %598 = vmatprep.mubr.bf16.mxu0 0
      %599 = vmatmul.mubr.bf16.gmra.mrb[0].mxu0 %v561
      %v600 = vpop.f32.mrb[0].mxu0
      %v601 = vadd.f32 0.0, %v600
      %v602 = vpop.f32.mrb[0].mxu0
      %v603 = vpop.f32.mrb[0].mxu0
      %v604 = vpop.f32.mrb[0].mxu0
      %605 = vdwg.mxu0
      %s606 = scalar_lea.vmem [#allocation2], 16
      %v607 = vld [vmem:[%s606] sm:$0xff]
      %v608 = vsel %vm279, %v601, -inf
      %609 = vmax.xlane.f32.xlu0 %v608
      %v610 = vpop.xlane.xlu0 %609
      %v611 = vmax.f32 %v607, %v610
      %v612 = vsub.f32 %v607, %v611
      %v613 = vmul.f32 %v612, 1.442695
      %v614 = vpow.pop %v613
      %616 = vset.pattern.permute.xlu0 0
      %617 = vperm.xlu0 %616, %v611
      %v618 = vpop.permute.xlu0 %617
      %v620 = vsub.f32 %v601, %v618
      %v621 = vmul.f32 %v620, 1.442695
      %v622 = vpow.pop %v621
      %s623 = scalar_lea.vmem [#allocation3], 16
      %v624 = vld [vmem:[%s623] sm:$0xff]
      %v625 = vmul.f32 %v614, %v624
      %v626 = vsel %vm279, %v622, 0.0
      %627 = vadd.xlane.f32.xlu0 %v626
      %v628 = vpop.xlane.xlu0 %627
      %v629 = vadd.f32 %v625, %v628
      %630 = vst.msk [vmem:[%s623] sm:$0xff] %vm348, %v629
      %v631 = vld [vmem:[#allocation4] sm:$0xff]
      %633 = vset.pattern.permute.xlu0 0
      %634 = vperm.xlu0 %633, %v614
      %v635 = vpop.permute.xlu0 %634
      %v637 = vmul.f32 %v635, %v631
      %v638 = vpack.c.bf16 %v622, %v622
      %639 = vrot.lane.b32.xlu0 %v499, 112
      %v640 = vpop.permute.xlu0 %639
      %v642 = vsel %vm279, %v638, 0
      %v645 = vsel %vm361, %v640, 0
      %647 = vmatprep.subr.bf16.mxu0 0
      %648 = vmatpush1.bf16.msra.mxu0 %v645
      %649 = vmatprep.subr.bf16.mxu0 0
      %650 = vmatpush1.bf16.msra.mxu0 0
      %651 = vmatprep.subr.bf16.mxu0 0
      %652 = vmatpush1.bf16.msra.mxu0 0
      %653 = vmatprep.subr.bf16.mxu0 0
      %654 = vmatpush1.bf16.msra.mxu0 0
      %655 = vmatprep.subr.bf16.mxu0 0
      %656 = vmatpush1.bf16.msra.mxu0 0
      %657 = vmatprep.subr.bf16.mxu0 0
      %658 = vmatpush1.bf16.msra.mxu0 0
      %659 = vmatprep.subr.bf16.mxu0 0
      %660 = vmatpush1.bf16.msra.mxu0 0
      %661 = vmatprep.subr.bf16.mxu0 0
      %662 = vmatpush1.bf16.msra.mxu0 0
      %663 = vmatprep.subr.bf16.mxu0 0
      %664 = vmatpush1.bf16.msra.mxu0 0
      %665 = vmatprep.subr.bf16.mxu0 0
      %666 = vmatpush1.bf16.msra.mxu0 0
      %667 = vmatprep.subr.bf16.mxu0 0
      %668 = vmatpush1.bf16.msra.mxu0 0
      %669 = vmatprep.subr.bf16.mxu0 0
      %670 = vmatpush1.bf16.msra.mxu0 0
      %671 = vmatprep.subr.bf16.mxu0 0
      %672 = vmatpush1.bf16.msra.mxu0 0
      %673 = vmatprep.subr.bf16.mxu0 0
      %674 = vmatpush1.bf16.msra.mxu0 0
      %675 = vmatprep.subr.bf16.mxu0 0
      %676 = vmatpush1.bf16.msra.mxu0 0
      %677 = vmatprep.subr.bf16.mxu0 0
      %678 = vmatpush1.bf16.msra.mxu0 0
      %679 = vmatprep.mubr.bf16.mxu0 0
      %680 = vmatmul.mubr.bf16.gmra.mrb[0].mxu0 %v642
      %v681 = vpop.f32.mrb[0].mxu0
      %v682 = vadd.f32 0.0, %v681
      %v683 = vpop.f32.mrb[0].mxu0
      %v684 = vpop.f32.mrb[0].mxu0
      %v685 = vpop.f32.mrb[0].mxu0
      %686 = vdwg.mxu0
      %688 = vrot.lane.b32.xlu0 %v682, 16
      %v689 = vpop.permute.xlu0 %688
      %v691 = vadd.f32 %v637, %v689
      %vm692 = vcmask 195712
      %693 = vst.msk [vmem:[#allocation4] sm:$0xff] %vm692, %v691
      %694 = vst.msk [vmem:[%s606] sm:$0xff] %vm348, %v611
      %695 = vrot.lane.b32.xlu0 %v410, 104
      %v696 = vpop.permute.xlu0 %695
      %697 = vrot.lane.b32.xlu0 %v415, 104
      %v698 = vpop.permute.xlu0 %697
      %v700 = vsel %vm279, %v696, 0
      %v703 = vsel %vm279, %v698, 0
      %705 = vmatprep.subr.bf16.mxu0 0
      %706 = vmatpush1.bf16.xpose.msra.mxu0 %v703
      %707 = vmatprep.subr.bf16.mxu0 0
      %708 = vmatpush1.bf16.xpose.msra.mxu0 0
      %709 = vmatprep.subr.bf16.mxu0 0
      %710 = vmatpush1.bf16.xpose.msra.mxu0 0
      %711 = vmatprep.subr.bf16.mxu0 0
      %712 = vmatpush1.bf16.xpose.msra.mxu0 0
      %713 = vmatprep.subr.bf16.mxu0 0
      %714 = vmatpush1.bf16.xpose.msra.mxu0 0
      %715 = vmatprep.subr.bf16.mxu0 0
      %716 = vmatpush1.bf16.xpose.msra.mxu0 0
      %717 = vmatprep.subr.bf16.mxu0 0
      %718 = vmatpush1.bf16.xpose.msra.mxu0 0
      %719 = vmatprep.subr.bf16.mxu0 0
      %720 = vmatpush1.bf16.xpose.msra.mxu0 0
      %721 = vmatprep.subr.bf16.mxu0 0
      %722 = vmatpush1.bf16.xpose.msra.mxu0 0
      %723 = vmatprep.subr.bf16.mxu0 0
      %724 = vmatpush1.bf16.xpose.msra.mxu0 0
      %725 = vmatprep.subr.bf16.mxu0 0
      %726 = vmatpush1.bf16.xpose.msra.mxu0 0
      %727 = vmatprep.subr.bf16.mxu0 0
      %728 = vmatpush1.bf16.xpose.msra.mxu0 0
      %729 = vmatprep.subr.bf16.mxu0 0
      %730 = vmatpush1.bf16.xpose.msra.mxu0 0
      %731 = vmatprep.subr.bf16.mxu0 0
      %732 = vmatpush1.bf16.xpose.msra.mxu0 0
      %733 = vmatprep.subr.bf16.mxu0 0
      %734 = vmatpush1.bf16.xpose.msra.mxu0 0
      %735 = vmatprep.subr.bf16.mxu0 0
      %736 = vmatpush1.bf16.xpose.msra.mxu0 0
      %737 = vmatprep.mubr.bf16.mxu0 0
      %738 = vmatmul.mubr.bf16.gmra.mrb[0].mxu0 %v700
      %v739 = vpop.f32.mrb[0].mxu0
      %v740 = vadd.f32 0.0, %v739
      %v741 = vpop.f32.mrb[0].mxu0
      %v742 = vpop.f32.mrb[0].mxu0
      %v743 = vpop.f32.mrb[0].mxu0
      %744 = vdwg.mxu0
      %s745 = scalar_lea.vmem [#allocation2], 24
      %v746 = vld [vmem:[%s745] sm:$0xff]
      %v747 = vsel %vm279, %v740, -inf
      %748 = vmax.xlane.f32.xlu0 %v747
      %v749 = vpop.xlane.xlu0 %748
      %v750 = vmax.f32 %v746, %v749
      %v751 = vsub.f32 %v746, %v750
      %v752 = vmul.f32 %v751, 1.442695
      %v753 = vpow.pop %v752
      %755 = vset.pattern.permute.xlu0 0
      %756 = vperm.xlu0 %755, %v750
      %v757 = vpop.permute.xlu0 %756
      %v759 = vsub.f32 %v740, %v757
      %v760 = vmul.f32 %v759, 1.442695
      %v761 = vpow.pop %v760
      %s762 = scalar_lea.vmem [#allocation3], 24
      %v763 = vld [vmem:[%s762] sm:$0xff]
      %v764 = vmul.f32 %v753, %v763
      %v765 = vsel %vm279, %v761, 0.0
      %766 = vadd.xlane.f32.xlu0 %v765
      %v767 = vpop.xlane.xlu0 %766
      %v768 = vadd.f32 %v764, %v767
      %769 = vst.msk [vmem:[%s762] sm:$0xff] %vm348, %v768
      %v770 = vld [vmem:[#allocation4] sm:$0xff]
      %772 = vset.pattern.permute.xlu0 0
      %773 = vperm.xlu0 %772, %v753
      %v774 = vpop.permute.xlu0 %773
      %v776 = vmul.f32 %v774, %v770
      %v777 = vpack.c.bf16 %v761, %v761
      %778 = vrot.lane.b32.xlu0 %v499, 104
      %v779 = vpop.permute.xlu0 %778
      %v781 = vsel %vm279, %v777, 0
      %v784 = vsel %vm361, %v779, 0
      %786 = vmatprep.subr.bf16.mxu0 0
      %787 = vmatpush1.bf16.msra.mxu0 %v784
      %788 = vmatprep.subr.bf16.mxu0 0
      %789 = vmatpush1.bf16.msra.mxu0 0
      %790 = vmatprep.subr.bf16.mxu0 0
      %791 = vmatpush1.bf16.msra.mxu0 0
      %792 = vmatprep.subr.bf16.mxu0 0
      %793 = vmatpush1.bf16.msra.mxu0 0
      %794 = vmatprep.subr.bf16.mxu0 0
      %795 = vmatpush1.bf16.msra.mxu0 0
      %796 = vmatprep.subr.bf16.mxu0 0
      %797 = vmatpush1.bf16.msra.mxu0 0
      %798 = vmatprep.subr.bf16.mxu0 0
      %799 = vmatpush1.bf16.msra.mxu0 0
      %800 = vmatprep.subr.bf16.mxu0 0
      %801 = vmatpush1.bf16.msra.mxu0 0
      %802 = vmatprep.subr.bf16.mxu0 0
      %803 = vmatpush1.bf16.msra.mxu0 0
      %804 = vmatprep.subr.bf16.mxu0 0
      %805 = vmatpush1.bf16.msra.mxu0 0
      %806 = vmatprep.subr.bf16.mxu0 0
      %807 = vmatpush1.bf16.msra.mxu0 0
      %808 = vmatprep.subr.bf16.mxu0 0
      %809 = vmatpush1.bf16.msra.mxu0 0
      %810 = vmatprep.subr.bf16.mxu0 0
      %811 = vmatpush1.bf16.msra.mxu0 0
      %812 = vmatprep.subr.bf16.mxu0 0
      %813 = vmatpush1.bf16.msra.mxu0 0
      %814 = vmatprep.subr.bf16.mxu0 0
      %815 = vmatpush1.bf16.msra.mxu0 0
      %816 = vmatprep.subr.bf16.mxu0 0
      %817 = vmatpush1.bf16.msra.mxu0 0
      %818 = vmatprep.mubr.bf16.mxu0 0
      %819 = vmatmul.mubr.bf16.gmra.mrb[0].mxu0 %v781
      %v820 = vpop.f32.mrb[0].mxu0
      %v821 = vadd.f32 0.0, %v820
      %v822 = vpop.f32.mrb[0].mxu0
      %v823 = vpop.f32.mrb[0].mxu0
      %v824 = vpop.f32.mrb[0].mxu0
      %825 = vdwg.mxu0
      %827 = vrot.lane.b32.xlu0 %v821, 24
      %v828 = vpop.permute.xlu0 %827
      %v830 = vadd.f32 %v776, %v828
      %vm831 = vcmask 261312
      %832 = vst.msk [vmem:[#allocation4] sm:$0xff] %vm831, %v830
      %833 = vst.msk [vmem:[%s745] sm:$0xff] %vm348, %v750
      // Predicated region
      $region37: #{multi_head_attention.4} parent=31 // pred_check
        %p834 = pneg %p261
      $region38: #{multi_head_attention.4} parent=31 // pred_check_branch
        %836 = sbr.rel (%p834) target = $region40
      $region39: #{multi_head_attention.4} parent=31 // pred_region
        %v837 = vld [vmem:[#allocation4] sm:$0xff]
        %v838 = vld [vmem:[#allocation3] sm:$0xff]
        %v839 = vrcp.pop %v838
        %841 = vset.pattern.permute.xlu0 0
        %842 = vperm.xlu0 %841, %v839
        %v843 = vpop.permute.xlu0 %842
        %v845 = vmul.f32 %v837, %v843
        %846 = vst.msk [vmem:[#allocation4] sm:$0xff] %vm279, %v845
        %v847 = vld [vmem:[#allocation4] sm:$0xff]
        %v848 = vld [vmem:[%s481] sm:$0xff]
        %v849 = vrcp.pop %v848
        %851 = vset.pattern.permute.xlu0 0
        %852 = vperm.xlu0 %851, %v849
        %v853 = vpop.permute.xlu0 %852
        %v855 = vmul.f32 %v847, %v853
        %856 = vst.msk [vmem:[#allocation4] sm:$0xff] %vm553, %v855
        %v857 = vld [vmem:[#allocation4] sm:$0xff]
        %v858 = vld [vmem:[%s623] sm:$0xff]
        %v859 = vrcp.pop %v858
        %861 = vset.pattern.permute.xlu0 0
        %862 = vperm.xlu0 %861, %v859
        %v863 = vpop.permute.xlu0 %862
        %v865 = vmul.f32 %v857, %v863
        %866 = vst.msk [vmem:[#allocation4] sm:$0xff] %vm692, %v865
        %v867 = vld [vmem:[#allocation4] sm:$0xff]
        %v868 = vld [vmem:[%s762] sm:$0xff]
        %v869 = vrcp.pop %v868
        %871 = vset.pattern.permute.xlu0 0
        %872 = vperm.xlu0 %871, %v869
        %v873 = vpop.permute.xlu0 %872
        %v875 = vmul.f32 %v867, %v873
        %876 = vst.msk [vmem:[#allocation4] sm:$0xff] %vm831, %v875
        %v877 = vld [vmem:[#allocation4] sm:$0xff]
        %v878 = vpack.c.bf16 %v877, %v877
        %vm879 = vcmask 257024
        %880 = vst.msk [vmem:[%s259] sm:$0xf] %vm879, %v878
      $region40: #{multi_head_attention.4} parent=31 // pred_fallthru
        _
      %p881 = scmp.lt.s32.totalorder %s19, 1
      %s882 = scalar_select %p881, %s19, 1
      %p883 = scmp.lt.s32.totalorder %s20, 0
      %s884 = scalar_select %p883, %s20, 0
      %s885 = sadd.s32 %s884, %s882
      %s886 = smul.addr %s885, 4
      %s887 = scalar_lea.vmem %s3, %s886
      // Predicated region
      $region41: #{multi_head_attention.4} parent=31 // pred_check
        %p888 = pneg %p137
      $region42: #{multi_head_attention.4} parent=31 // pred_check_branch
        %890 = sbr.rel (%p888) target = $region44
      $region43: #{multi_head_attention.4} parent=31 // pred_region
        _
      $region44: #{multi_head_attention.4} parent=31 // pred_fallthru
        _
    $region32: #{multi_head_attention.4} parent=5 // pred_fallthru
      _
    %p891 = scmp.le.s32.totalorder 2, %s9
    // Predicated region
    $region45: #{multi_head_attention.4} parent=5 // pred_check
      %p892 = pneg %p891
    $region46: #{multi_head_attention.4} parent=5 // pred_check_branch
      %894 = sbr.rel (%p892) target = $region48
    $region47: #{multi_head_attention.4} parent=5 // pred_region
      %s895 = ssub.s32 %s9, 2
      // Predicated region
      $region49: #{multi_head_attention.4} parent=47 // pred_check
        %p896 = pneg %p143
      $region50: #{multi_head_attention.4} parent=47 // pred_check_branch
        %898 = sbr.rel (%p896) target = $region52
      $region51: #{multi_head_attention.4} parent=47 // pred_region
        %p899 = scmp.lt.s32.totalorder %s22, 1
        %s900 = scalar_select %p899, %s22, 1
        %p901 = scmp.lt.s32.totalorder %s23, 0
        %s902 = scalar_select %p901, %s23, 0
        %s903 = sadd.s32 %s902, %s900
        %s904 = smul.addr %s903, 4
        %s905 = scalar_lea.vmem %s3, %s904
      $region52: #{multi_head_attention.4} parent=47 // pred_fallthru
        _
    $region48: #{multi_head_attention.4} parent=5 // pred_fallthru
      _
  $region6: #{multi_head_attention.4} parent=0 // loop_footer
    %s13 = sadd.s32 1, %s9
  $region7: #{multi_head_attention.4} parent=0 // loop_footer_branch
    %8 = sbr.rel target = $region3
  $region8: #{multi_head_attention.4} parent=0 // loop_exit
    _

</llo_original>
